<compile_context>
chip_gen: v6e
topology: v6e:2x2x1
jax: 0.10.0
libtpu: 0.0.40
codegen_flags: <defaults>
</compile_context>

<pallas_src>
import math
import functools

import jax
import jax.numpy as jnp
from jax.experimental import pallas as pl
from jax.experimental.pallas import tpu as pltpu


def _mha_kernel(x_ref, wq_ref, bq_ref, wk_ref, bk_ref, wv_ref, bv_ref,
                wo_ref, bo_ref, y_ref, attn_ref, k_scr, v_scr,
                *, num_heads, dim_head, q_tile):
    H, dh, TQ = num_heads, dim_head, q_tile

    # ---- K / V projection: once per batch element, reused by every q-tile ----
    @pl.when(pl.program_id(1) == 0)
    def _():
        xb = x_ref[0]                                                        # (S, D) bf16
        k = jnp.dot(xb, wk_ref[...], preferred_element_type=jnp.float32) + bk_ref[...]
        v = jnp.dot(xb, wv_ref[...], preferred_element_type=jnp.float32) + bv_ref[...]
        for h in range(H):                       # head split, once per batch (amortized)
            lo = h * dh
            # K stored transposed: (dh, S) -> lane dim = S (no dh->128 padding, MXU-native feed)
            k_scr[h] = k[:, lo:lo + dh].T.astype(jnp.bfloat16)
            v_scr[h] = v[:, lo:lo + dh].astype(jnp.bfloat16)

    # ---- Q projection for this q-tile (scale already folded into Wq/bq) ----
    i = pl.program_id(1)
    q_start = pl.multiple_of(i * TQ, TQ)
    xq = x_ref[0, pl.ds(q_start, TQ), :]                                     # (TQ, D) bf16
    q = jnp.dot(xq, wq_ref[...], preferred_element_type=jnp.float32) + bq_ref[...]
    qb = q.astype(jnp.bfloat16)
    # head split as a value (no VMEM scratch round trip): (H, TQ, dh)
    qh = jnp.stack([qb[:, h * dh:(h + 1) * dh] for h in range(H)], axis=0)

    # ---- scores + softmax (batched over heads: one contiguous MXU stream) ----
    s = jnp.einsum("hqd,hds->hqs", qh, k_scr[...],
                   preferred_element_type=jnp.float32)                       # (H, TQ, S) f32
    m = jnp.max(s, axis=-1, keepdims=True)
    e = jnp.exp(s - m)
    l = jnp.sum(e, axis=-1, keepdims=True)
    inv_l = 1.0 / l                              # exact f32 reciprocal on (H, TQ, 1): cheap + accurate
    p = e * inv_l                                # exact softmax for the returned attention
    attn_ref[0] = p

    # ---- P @ V (batched over heads) ----
    yh = jnp.einsum("hqk,hkd->hqd", p.astype(jnp.bfloat16), v_scr[...],
                    preferred_element_type=jnp.float32)                      # (H, TQ, dh) f32
    # concat heads as a value (no f32 scratch store/reload)
    ycat = jnp.concatenate([yh[h] for h in range(H)], axis=-1)               # (TQ, D) f32

    # ---- output projection ----
    out = jnp.dot(ycat.astype(jnp.bfloat16), wo_ref[...],
                  preferred_element_type=jnp.float32) + bo_ref[...]
    y_ref[0] = out


def _vmem_capacity_bytes():
    """Per-core VMEM capacity (64 MiB on v7x, 128 MiB on v5e/v6e); conservative fallback."""
    try:
        info = pltpu.get_tpu_info()
        cap = getattr(info, "vmem_capacity_bytes", None)
        if cap:
            return int(cap)
    except Exception:
        pass
    return 64 * 1024 * 1024


def _choose_q_tile(seq_len, dim, num_heads, dim_head, budget_bytes, *, max_tile=512):
    """Largest TQ (multiple of 8, dividing S) whose live VMEM fits the budget."""
    if seq_len % 8 != 0:
        return seq_len                           # fall back to one full-sequence tile
    ru = lambda x, m: ((x + m - 1) // m) * m
    # TQ-independent live VMEM:
    fixed = (2 * seq_len * ru(dim, 128) * 2                              # x bf16, double-buffered
             + 4 * ru(dim, 16) * ru(dim, 128) * 2                        # Wq/Wk/Wv/Wo bf16, single-buffered
             + 4 * 8 * ru(dim, 128) * 4                                  # biases f32
             + num_heads * ru(dim_head, 16) * ru(seq_len, 128) * 2       # K^T scratch (H, dh, S) bf16
             + num_heads * ru(seq_len, 16) * ru(dim_head, 128) * 2)      # V scratch (H, S, dh) bf16 (lane-padded)
    # Bytes per TQ row: double-buffered f32 attn block + s/e/p softmax temps (~5*H*S*4),
    # double-buffered f32 y block, and the q / ycat value tiles.
    per_row = (5 * num_heads * ru(seq_len, 128) * 4
               + 2 * ru(dim, 128) * 4
               + 6 * ru(dim, 128))
    avail = budget_bytes - fixed
    cap = min(seq_len, max_tile, max(avail // per_row, 8))
    cap -= cap % 8
    cap = max(cap, 8)
    t = cap
    while t > 8 and seq_len % t != 0:
        t -= 8
    return t


def multi_head_dispatch(query, wq, bq, wk, bk, wv, bv, wo, bo, *, num_heads, q_tile=None):
    """query: (B, S, D) float32. Returns (y: (B,S,D) f32, attn: (B,H,S,S) f32)."""
    B, S, D = query.shape
    assert D % num_heads == 0
    dim_head = D // num_heads
    scale = 1.0 / math.sqrt(dim_head)

    cap = _vmem_capacity_bytes()
    vmem_limit = max(int(cap * 0.85), 32 * 1024 * 1024)      # ~54 MiB on v7x, ~108 MiB on v5e/v6e
    if q_tile is None:
        q_tile = _choose_q_tile(S, D, num_heads, dim_head, int(cap * 0.65))
    assert S % q_tile == 0 and (q_tile % 8 == 0 or q_tile == S)
    n_q = S // q_tile

    # bf16 activations/weights feed the MXU; all accumulation stays f32.
    # 1/sqrt(d_head) is folded into Wq/bq once (constant folding on weights, not activations).
    x_b = query.astype(jnp.bfloat16)
    wq_b = (wq * scale).astype(jnp.bfloat16)
    bq_s = (bq * scale).astype(jnp.float32)
    wk_b, wv_b, wo_b = (w.astype(jnp.bfloat16) for w in (wk, wv, wo))

    kernel = functools.partial(_mha_kernel, num_heads=num_heads, dim_head=dim_head, q_tile=q_tile)

    # Weights/biases never change across the grid -> single-buffer (no double-buffer VMEM waste).
    w_spec = pl.BlockSpec((D, D), lambda b, i: (0, 0), pipeline_mode=pl.Buffered(1))
    b_spec = pl.BlockSpec((1, D), lambda b, i: (0, 0), pipeline_mode=pl.Buffered(1))

    y, attn = pl.pallas_call(
        kernel,
        out_shape=(
            jax.ShapeDtypeStruct((B, S, D), jnp.float32),
            jax.ShapeDtypeStruct((B, num_heads, S, S), jnp.float32),
        ),
        grid_spec=pltpu.PrefetchScalarGridSpec(
            num_scalar_prefetch=0,
            grid=(B, n_q),
            in_specs=[
                pl.BlockSpec((1, S, D), lambda b, i: (b, 0, 0)),   # x (bf16): full seq per batch
                w_spec, b_spec,    # Wq, bq (scale pre-folded)
                w_spec, b_spec,    # Wk, bk
                w_spec, b_spec,    # Wv, bv
                w_spec, b_spec,    # Wo, bo
            ],
            out_specs=[
                pl.BlockSpec((1, q_tile, D), lambda b, i: (b, i, 0)),
                pl.BlockSpec((1, num_heads, q_tile, S), lambda b, i: (b, 0, i, 0)),
            ],
            scratch_shapes=[
                pltpu.VMEM((num_heads, dim_head, S), jnp.bfloat16),   # K^T, head-split (lane-dense)
                pltpu.VMEM((num_heads, S, dim_head), jnp.bfloat16),   # V,   head-split
            ],
        ),
        compiler_params=pltpu.CompilerParams(
            # Batch axis feeds both TensorCores; q-tile axis is "arbitrary" (K/V scratch carried).
            dimension_semantics=("parallel", "arbitrary"),
            vmem_limit_bytes=vmem_limit,
        ),
    )(x_b, wq_b, bq_s, wk_b, bk, wv_b, bv, wo_b, bo)
    return y, attn


def _ref_forward(query, wq, bq, wk, bk, wv, bv, wo, bo, num_heads):
    """Pure-JAX (f32) reference."""
    B, S, D = query.shape
    dh = D // num_heads
    q = query @ wq + bq
    k = query @ wk + bk
    v = query @ wv + bv
    split = lambda t: t.reshape(B, S, num_heads, dh).transpose(0, 2, 1, 3)  # (B,H,S,dh)
    qh, kh, vh = split(q), split(k), split(v)
    s = jnp.einsum("bhqd,bhkd->bhqk", qh / math.sqrt(dh), kh)
    p = jax.nn.softmax(s, axis=-1)
    y = jnp.einsum("bhqk,bhkd->bhqd", p, vh)
    y = y.transpose(0, 2, 1, 3).reshape(B, S, D)
    return y @ wo + bo, p


if __name__ == "__main__":
    B, S, D, H = 2, 16, 32, 4      # dim_head = 8; q_tile=8 -> grid (2, 2) exercises tiling

    key = jax.random.PRNGKey(0)
    keys = jax.random.split(key, 8)
    scale = 1.0 / math.sqrt(D)
    query = jax.random.normal(keys[0], (B, S, D), dtype=jnp.float32)
    wq = jax.random.normal(keys[1], (D, D), dtype=jnp.float32) * scale
    wk = jax.random.normal(keys[2], (D, D), dtype=jnp.float32) * scale
    wv = jax.random.normal(keys[3], (D, D), dtype=jnp.float32) * scale
    wo = jax.random.normal(keys[4], (D, D), dtype=jnp.float32) * scale
    bq = jax.random.normal(keys[5], (1, D), dtype=jnp.float32) * 0.1
    bk = jax.random.normal(keys[6], (1, D), dtype=jnp.float32) * 0.1
    bv = jax.random.normal(keys[7], (1, D), dtype=jnp.float32) * 0.1
    bo = jnp.zeros((1, D), dtype=jnp.float32)   # output-proj bias is zero-initialized in __init__

    y, attn = multi_head_dispatch(query, wq, bq, wk, bk, wv, bv, wo, bo,
                                  num_heads=H, q_tile=8)
    jax.block_until_ready((y, attn))

    y_ref, attn_ref = _ref_forward(query, wq, bq, wk, bk, wv, bv, wo, bo, H)
    assert y.shape == (B, S, D) and attn.shape == (B, H, S, S)
    # bf16 matmuls (f32 accumulation) inside the kernel -> loosened tolerances vs f32 reference.
    assert jnp.allclose(y, y_ref, atol=5e-2, rtol=5e-2), float(jnp.max(jnp.abs(y - y_ref)))
    assert jnp.allclose(attn, attn_ref, atol=5e-2, rtol=5e-2), float(jnp.max(jnp.abs(attn - attn_ref)))
    # softmax denominator is an exact f32 reciprocal now -> rows sum to 1 tightly.
    assert jnp.allclose(jnp.sum(attn, axis=-1), 1.0, atol=1e-3)

    print("KERNEL_OK")
</pallas_src>

<mosaic_0001>
module attributes {stable_mosaic.version = 11 : i64} {
  func.func @_mha_kernel(%arg0: i32, %arg1: i32, %arg2: memref<1x16x32xbf16, #tpu.memory_space<vmem>>, %arg3: memref<32x32xbf16, #tpu.memory_space<vmem>>, %arg4: memref<1x32xf32, #tpu.memory_space<vmem>>, %arg5: memref<32x32xbf16, #tpu.memory_space<vmem>>, %arg6: memref<1x32xf32, #tpu.memory_space<vmem>>, %arg7: memref<32x32xbf16, #tpu.memory_space<vmem>>, %arg8: memref<1x32xf32, #tpu.memory_space<vmem>>, %arg9: memref<32x32xbf16, #tpu.memory_space<vmem>>, %arg10: memref<1x32xf32, #tpu.memory_space<vmem>>, %arg11: memref<1x8x32xf32, #tpu.memory_space<vmem>>, %arg12: memref<1x4x8x16xf32, #tpu.memory_space<vmem>>, %arg13: memref<4x8x16xbf16, #tpu.memory_space<vmem>>, %arg14: memref<4x16x8xbf16, #tpu.memory_space<vmem>>) attributes {dimension_semantics = [#tpu.dimension_semantics<parallel>, #tpu.dimension_semantics<arbitrary>], iteration_bounds = array<i64: 2, 2>, scalar_prefetch = 0 : i64, scratch_operands = 2 : i64, tpu.core_type = #tpu.core_type<tc>, window_params = [{transform_indices = @transform_0, window_bounds = array<i64: 1, 16, 32>}, {pipeline_mode = #tpu.pipeline_mode<synchronous>, transform_indices = @transform_1, window_bounds = array<i64: 32, 32>}, {pipeline_mode = #tpu.pipeline_mode<synchronous>, transform_indices = @transform_2, window_bounds = array<i64: 1, 32>}, {pipeline_mode = #tpu.pipeline_mode<synchronous>, transform_indices = @transform_3, window_bounds = array<i64: 32, 32>}, {pipeline_mode = #tpu.pipeline_mode<synchronous>, transform_indices = @transform_4, window_bounds = array<i64: 1, 32>}, {pipeline_mode = #tpu.pipeline_mode<synchronous>, transform_indices = @transform_5, window_bounds = array<i64: 32, 32>}, {pipeline_mode = #tpu.pipeline_mode<synchronous>, transform_indices = @transform_6, window_bounds = array<i64: 1, 32>}, {pipeline_mode = #tpu.pipeline_mode<synchronous>, transform_indices = @transform_7, window_bounds = array<i64: 32, 32>}, {pipeline_mode = #tpu.pipeline_mode<synchronous>, transform_indices = @transform_8, window_bounds = array<i64: 1, 32>}, {transform_indices = @transform_9, window_bounds = array<i64: 1, 8, 32>}, {transform_indices = @transform_10, window_bounds = array<i64: 1, 4, 8, 16>}]} {
    %c0_i32 = arith.constant 0 : i32
    %0 = arith.cmpi eq, %arg1, %c0_i32 : i32
    %1 = arith.extui %0 : i1 to i32
    %c0_i32_0 = arith.constant 0 : i32
    %2 = arith.cmpi ne, %1, %c0_i32_0 : i32
    scf.if %2 {
      %c0_29 = arith.constant 0 : index
      %c0_30 = arith.constant 0 : index
      %c0_31 = arith.constant 0 : index
      %60 = vector.load %arg2[%c0_29, %c0_30, %c0_31] : memref<1x16x32xbf16, #tpu.memory_space<vmem>>, vector<1x16x32xbf16>
      %61 = vector.shape_cast %60 : vector<1x16x32xbf16> to vector<16x32xbf16>
      %c0_32 = arith.constant 0 : index
      %c0_33 = arith.constant 0 : index
      %62 = vector.load %arg5[%c0_32, %c0_33] : memref<32x32xbf16, #tpu.memory_space<vmem>>, vector<32x32xbf16>
      %cst_34 = arith.constant dense<0.000000e+00> : vector<16x32xf32>
      %63 = tpu.matmul %61, %62, %cst_34 {dimension_numbers = #tpu.dot_dimension_numbers<[1], [0], [0], [1], [0, 0, 1, 1], [], []>} : vector<16x32xbf16>, vector<32x32xbf16>, vector<16x32xf32> -> vector<16x32xf32>
      %c0_35 = arith.constant 0 : index
      %c0_36 = arith.constant 0 : index
      %64 = vector.load %arg6[%c0_35, %c0_36] : memref<1x32xf32, #tpu.memory_space<vmem>>, vector<1x32xf32>
      %65 = vector.broadcast %64 : vector<1x32xf32> to vector<16x32xf32>
      %66 = arith.addf %63, %65 : vector<16x32xf32>
      %c0_37 = arith.constant 0 : index
      %c0_38 = arith.constant 0 : index
      %67 = vector.load %arg7[%c0_37, %c0_38] : memref<32x32xbf16, #tpu.memory_space<vmem>>, vector<32x32xbf16>
      %cst_39 = arith.constant dense<0.000000e+00> : vector<16x32xf32>
      %68 = tpu.matmul %61, %67, %cst_39 {dimension_numbers = #tpu.dot_dimension_numbers<[1], [0], [0], [1], [0, 0, 1, 1], [], []>} : vector<16x32xbf16>, vector<32x32xbf16>, vector<16x32xf32> -> vector<16x32xf32>
      %c0_40 = arith.constant 0 : index
      %c0_41 = arith.constant 0 : index
      %69 = vector.load %arg8[%c0_40, %c0_41] : memref<1x32xf32, #tpu.memory_space<vmem>>, vector<1x32xf32>
      %70 = vector.broadcast %69 : vector<1x32xf32> to vector<16x32xf32>
      %71 = arith.addf %68, %70 : vector<16x32xf32>
      %72 = vector.extract_strided_slice %66 {offsets = [0, 0], sizes = [16, 8], strides = [1, 1]} : vector<16x32xf32> to vector<16x8xf32>
      %73 = tpu.transpose %72, [1, 0] : vector<16x8xf32> -> vector<8x16xf32>
      %74 = arith.truncf %73 : vector<8x16xf32> to vector<8x16xbf16>
      %c0_42 = arith.constant 0 : index
      %c0_43 = arith.constant 0 : index
      %c0_44 = arith.constant 0 : index
      %75 = vector.load %arg13[%c0_42, %c0_43, %c0_44] : memref<4x8x16xbf16, #tpu.memory_space<vmem>>, vector<1x8x16xbf16>
      %76 = vector.shape_cast %75 : vector<1x8x16xbf16> to vector<8x16xbf16>
      %77 = vector.shape_cast %74 : vector<8x16xbf16> to vector<1x8x16xbf16>
      tpu.vector_store %arg13[%c0_42, %c0_43, %c0_44], %77 {strides = array<i32>} : memref<4x8x16xbf16, #tpu.memory_space<vmem>>, vector<1x8x16xbf16>,
      %78 = vector.extract_strided_slice %71 {offsets = [0, 0], sizes = [16, 8], strides = [1, 1]} : vector<16x32xf32> to vector<16x8xf32>
      %79 = arith.truncf %78 : vector<16x8xf32> to vector<16x8xbf16>
      %c0_45 = arith.constant 0 : index
      %c0_46 = arith.constant 0 : index
      %c0_47 = arith.constant 0 : index
      %80 = vector.load %arg14[%c0_45, %c0_46, %c0_47] : memref<4x16x8xbf16, #tpu.memory_space<vmem>>, vector<1x16x8xbf16>
      %81 = vector.shape_cast %80 : vector<1x16x8xbf16> to vector<16x8xbf16>
      %82 = vector.shape_cast %79 : vector<16x8xbf16> to vector<1x16x8xbf16>
      tpu.vector_store %arg14[%c0_45, %c0_46, %c0_47], %82 {strides = array<i32>} : memref<4x16x8xbf16, #tpu.memory_space<vmem>>, vector<1x16x8xbf16>,
      %83 = vector.extract_strided_slice %66 {offsets = [0, 8], sizes = [16, 8], strides = [1, 1]} : vector<16x32xf32> to vector<16x8xf32>
      %84 = tpu.transpose %83, [1, 0] : vector<16x8xf32> -> vector<8x16xf32>
      %85 = arith.truncf %84 : vector<8x16xf32> to vector<8x16xbf16>
      %c1 = arith.constant 1 : index
      %c0_48 = arith.constant 0 : index
      %c0_49 = arith.constant 0 : index
      %86 = vector.load %arg13[%c1, %c0_48, %c0_49] : memref<4x8x16xbf16, #tpu.memory_space<vmem>>, vector<1x8x16xbf16>
      %87 = vector.shape_cast %86 : vector<1x8x16xbf16> to vector<8x16xbf16>
      %88 = vector.shape_cast %85 : vector<8x16xbf16> to vector<1x8x16xbf16>
      tpu.vector_store %arg13[%c1, %c0_48, %c0_49], %88 {strides = array<i32>} : memref<4x8x16xbf16, #tpu.memory_space<vmem>>, vector<1x8x16xbf16>,
      %89 = vector.extract_strided_slice %71 {offsets = [0, 8], sizes = [16, 8], strides = [1, 1]} : vector<16x32xf32> to vector<16x8xf32>
      %90 = arith.truncf %89 : vector<16x8xf32> to vector<16x8xbf16>
      %c1_50 = arith.constant 1 : index
      %c0_51 = arith.constant 0 : index
      %c0_52 = arith.constant 0 : index
      %91 = vector.load %arg14[%c1_50, %c0_51, %c0_52] : memref<4x16x8xbf16, #tpu.memory_space<vmem>>, vector<1x16x8xbf16>
      %92 = vector.shape_cast %91 : vector<1x16x8xbf16> to vector<16x8xbf16>
      %93 = vector.shape_cast %90 : vector<16x8xbf16> to vector<1x16x8xbf16>
      tpu.vector_store %arg14[%c1_50, %c0_51, %c0_52], %93 {strides = array<i32>} : memref<4x16x8xbf16, #tpu.memory_space<vmem>>, vector<1x16x8xbf16>,
      %94 = vector.extract_strided_slice %66 {offsets = [0, 16], sizes = [16, 8], strides = [1, 1]} : vector<16x32xf32> to vector<16x8xf32>
      %95 = tpu.transpose %94, [1, 0] : vector<16x8xf32> -> vector<8x16xf32>
      %96 = arith.truncf %95 : vector<8x16xf32> to vector<8x16xbf16>
      %c2 = arith.constant 2 : index
      %c0_53 = arith.constant 0 : index
      %c0_54 = arith.constant 0 : index
      %97 = vector.load %arg13[%c2, %c0_53, %c0_54] : memref<4x8x16xbf16, #tpu.memory_space<vmem>>, vector<1x8x16xbf16>
      %98 = vector.shape_cast %97 : vector<1x8x16xbf16> to vector<8x16xbf16>
      %99 = vector.shape_cast %96 : vector<8x16xbf16> to vector<1x8x16xbf16>
      tpu.vector_store %arg13[%c2, %c0_53, %c0_54], %99 {strides = array<i32>} : memref<4x8x16xbf16, #tpu.memory_space<vmem>>, vector<1x8x16xbf16>,
      %100 = vector.extract_strided_slice %71 {offsets = [0, 16], sizes = [16, 8], strides = [1, 1]} : vector<16x32xf32> to vector<16x8xf32>
      %101 = arith.truncf %100 : vector<16x8xf32> to vector<16x8xbf16>
      %c2_55 = arith.constant 2 : index
      %c0_56 = arith.constant 0 : index
      %c0_57 = arith.constant 0 : index
      %102 = vector.load %arg14[%c2_55, %c0_56, %c0_57] : memref<4x16x8xbf16, #tpu.memory_space<vmem>>, vector<1x16x8xbf16>
      %103 = vector.shape_cast %102 : vector<1x16x8xbf16> to vector<16x8xbf16>
      %104 = vector.shape_cast %101 : vector<16x8xbf16> to vector<1x16x8xbf16>
      tpu.vector_store %arg14[%c2_55, %c0_56, %c0_57], %104 {strides = array<i32>} : memref<4x16x8xbf16, #tpu.memory_space<vmem>>, vector<1x16x8xbf16>,
      %105 = vector.extract_strided_slice %66 {offsets = [0, 24], sizes = [16, 8], strides = [1, 1]} : vector<16x32xf32> to vector<16x8xf32>
      %106 = tpu.transpose %105, [1, 0] : vector<16x8xf32> -> vector<8x16xf32>
      %107 = arith.truncf %106 : vector<8x16xf32> to vector<8x16xbf16>
      %c3 = arith.constant 3 : index
      %c0_58 = arith.constant 0 : index
      %c0_59 = arith.constant 0 : index
      %108 = vector.load %arg13[%c3, %c0_58, %c0_59] : memref<4x8x16xbf16, #tpu.memory_space<vmem>>, vector<1x8x16xbf16>
      %109 = vector.shape_cast %108 : vector<1x8x16xbf16> to vector<8x16xbf16>
      %110 = vector.shape_cast %107 : vector<8x16xbf16> to vector<1x8x16xbf16>
      tpu.vector_store %arg13[%c3, %c0_58, %c0_59], %110 {strides = array<i32>} : memref<4x8x16xbf16, #tpu.memory_space<vmem>>, vector<1x8x16xbf16>,
      %111 = vector.extract_strided_slice %71 {offsets = [0, 24], sizes = [16, 8], strides = [1, 1]} : vector<16x32xf32> to vector<16x8xf32>
      %112 = arith.truncf %111 : vector<16x8xf32> to vector<16x8xbf16>
      %c3_60 = arith.constant 3 : index
      %c0_61 = arith.constant 0 : index
      %c0_62 = arith.constant 0 : index
      %113 = vector.load %arg14[%c3_60, %c0_61, %c0_62] : memref<4x16x8xbf16, #tpu.memory_space<vmem>>, vector<1x16x8xbf16>
      %114 = vector.shape_cast %113 : vector<1x16x8xbf16> to vector<16x8xbf16>
      %115 = vector.shape_cast %112 : vector<16x8xbf16> to vector<1x16x8xbf16>
      tpu.vector_store %arg14[%c3_60, %c0_61, %c0_62], %115 {strides = array<i32>} : memref<4x16x8xbf16, #tpu.memory_space<vmem>>, vector<1x16x8xbf16>,
    } else {
    }
    %c8_i32 = arith.constant 8 : i32
    %3 = arith.muli %arg1, %c8_i32 : i32
    %4 = tpu.assume_multiple %3, 8 : i32
    %c0 = arith.constant 0 : index
    %5 = arith.index_cast %4 : i32 to index
    %c0_1 = arith.constant 0 : index
    %6 = vector.load %arg2[%c0, %5, %c0_1] : memref<1x16x32xbf16, #tpu.memory_space<vmem>>, vector<1x8x32xbf16>
    %7 = vector.shape_cast %6 : vector<1x8x32xbf16> to vector<8x32xbf16>
    %c0_2 = arith.constant 0 : index
    %c0_3 = arith.constant 0 : index
    %8 = vector.load %arg3[%c0_2, %c0_3] : memref<32x32xbf16, #tpu.memory_space<vmem>>, vector<32x32xbf16>
    %cst = arith.constant dense<0.000000e+00> : vector<8x32xf32>
    %9 = tpu.matmul %7, %8, %cst {dimension_numbers = #tpu.dot_dimension_numbers<[1], [0], [0], [1], [0, 0, 1, 1], [], []>} : vector<8x32xbf16>, vector<32x32xbf16>, vector<8x32xf32> -> vector<8x32xf32>
    %c0_4 = arith.constant 0 : index
    %c0_5 = arith.constant 0 : index
    %10 = vector.load %arg4[%c0_4, %c0_5] : memref<1x32xf32, #tpu.memory_space<vmem>>, vector<1x32xf32>
    %11 = vector.broadcast %10 : vector<1x32xf32> to vector<8x32xf32>
    %12 = arith.addf %9, %11 : vector<8x32xf32>
    %13 = arith.truncf %12 : vector<8x32xf32> to vector<8x32xbf16>
    %14 = vector.extract_strided_slice %13 {offsets = [0, 0], sizes = [8, 8], strides = [1, 1]} : vector<8x32xbf16> to vector<8x8xbf16>
    %15 = vector.extract_strided_slice %13 {offsets = [0, 8], sizes = [8, 8], strides = [1, 1]} : vector<8x32xbf16> to vector<8x8xbf16>
    %16 = vector.extract_strided_slice %13 {offsets = [0, 16], sizes = [8, 8], strides = [1, 1]} : vector<8x32xbf16> to vector<8x8xbf16>
    %17 = vector.extract_strided_slice %13 {offsets = [0, 24], sizes = [8, 8], strides = [1, 1]} : vector<8x32xbf16> to vector<8x8xbf16>
    %18 = vector.shape_cast %14 : vector<8x8xbf16> to vector<1x8x8xbf16>
    %19 = vector.shape_cast %15 : vector<8x8xbf16> to vector<1x8x8xbf16>
    %20 = vector.shape_cast %16 : vector<8x8xbf16> to vector<1x8x8xbf16>
    %21 = vector.shape_cast %17 : vector<8x8xbf16> to vector<1x8x8xbf16>
    %22 = tpu.concatenate %18, %19, %20, %21 in 0 : vector<1x8x8xbf16>, vector<1x8x8xbf16>, vector<1x8x8xbf16>, vector<1x8x8xbf16> -> vector<4x8x8xbf16>
    %c0_6 = arith.constant 0 : index
    %c0_7 = arith.constant 0 : index
    %c0_8 = arith.constant 0 : index
    %23 = vector.load %arg13[%c0_6, %c0_7, %c0_8] : memref<4x8x16xbf16, #tpu.memory_space<vmem>>, vector<4x8x16xbf16>
    "tpu.trace_start"() <{level = 10 : i32, message = "hqd,hds->hqs"}> : () -> ()
    %cst_9 = arith.constant dense<0.000000e+00> : vector<4x8x16xf32>
    %24 = tpu.matmul %22, %23, %cst_9 {dimension_numbers = #tpu.dot_dimension_numbers<[2], [1], [1], [2], [0, 0, 0, 1, 1, 2], [0], [0]>} : vector<4x8x8xbf16>, vector<4x8x16xbf16>, vector<4x8x16xf32> -> vector<4x8x16xf32>
    "tpu.trace_stop"() : () -> ()
    %cst_10 = arith.constant dense<0xFF800000> : vector<4x8xf32>
    %25 = vector.multi_reduction <maximumf>, %24, %cst_10 [2] : vector<4x8x16xf32> to vector<4x8xf32>
    %26 = vector.shape_cast %25 : vector<4x8xf32> to vector<4x8x1xf32>
    %27 = vector.broadcast %26 : vector<4x8x1xf32> to vector<4x8x16xf32>
    %28 = arith.subf %24, %27 : vector<4x8x16xf32>
    %29 = math.exp %28 : vector<4x8x16xf32>
    %cst_11 = arith.constant dense<0.000000e+00> : vector<4x8xf32>
    %30 = vector.multi_reduction <add>, %29, %cst_11 [2] : vector<4x8x16xf32> to vector<4x8xf32>
    %31 = vector.shape_cast %30 : vector<4x8xf32> to vector<4x8x1xf32>
    %cst_12 = arith.constant 1.000000e+00 : f32
    %32 = vector.broadcast %cst_12 : f32 to vector<4x8x1xf32>
    %33 = arith.divf %32, %31 : vector<4x8x1xf32>
    %34 = vector.broadcast %33 : vector<4x8x1xf32> to vector<4x8x16xf32>
    %35 = arith.mulf %29, %34 : vector<4x8x16xf32>
    %c0_13 = arith.constant 0 : index
    %c0_14 = arith.constant 0 : index
    %c0_15 = arith.constant 0 : index
    %c0_16 = arith.constant 0 : index
    %36 = vector.load %arg12[%c0_13, %c0_14, %c0_15, %c0_16] : memref<1x4x8x16xf32, #tpu.memory_space<vmem>>, vector<1x4x8x16xf32>
    %37 = vector.shape_cast %36 : vector<1x4x8x16xf32> to vector<4x8x16xf32>
    %38 = vector.shape_cast %35 : vector<4x8x16xf32> to vector<1x4x8x16xf32>
    tpu.vector_store %arg12[%c0_13, %c0_14, %c0_15, %c0_16], %38 {strides = array<i32>} : memref<1x4x8x16xf32, #tpu.memory_space<vmem>>, vector<1x4x8x16xf32>,
    %39 = arith.truncf %35 : vector<4x8x16xf32> to vector<4x8x16xbf16>
    %c0_17 = arith.constant 0 : index
    %c0_18 = arith.constant 0 : index
    %c0_19 = arith.constant 0 : index
    %40 = vector.load %arg14[%c0_17, %c0_18, %c0_19] : memref<4x16x8xbf16, #tpu.memory_space<vmem>>, vector<4x16x8xbf16>
    "tpu.trace_start"() <{level = 10 : i32, message = "hqk,hkd->hqd"}> : () -> ()
    %cst_20 = arith.constant dense<0.000000e+00> : vector<4x8x8xf32>
    %41 = tpu.matmul %39, %40, %cst_20 {dimension_numbers = #tpu.dot_dimension_numbers<[2], [1], [1], [2], [0, 0, 0, 1, 1, 2], [0], [0]>} : vector<4x8x16xbf16>, vector<4x16x8xbf16>, vector<4x8x8xf32> -> vector<4x8x8xf32>
    "tpu.trace_stop"() : () -> ()
    %42 = vector.extract_strided_slice %41 {offsets = [0, 0, 0], sizes = [1, 8, 8], strides = [1, 1, 1]} : vector<4x8x8xf32> to vector<1x8x8xf32>
    %43 = vector.shape_cast %42 : vector<1x8x8xf32> to vector<8x8xf32>
    %44 = vector.extract_strided_slice %41 {offsets = [1, 0, 0], sizes = [1, 8, 8], strides = [1, 1, 1]} : vector<4x8x8xf32> to vector<1x8x8xf32>
    %45 = vector.shape_cast %44 : vector<1x8x8xf32> to vector<8x8xf32>
    %46 = vector.extract_strided_slice %41 {offsets = [2, 0, 0], sizes = [1, 8, 8], strides = [1, 1, 1]} : vector<4x8x8xf32> to vector<1x8x8xf32>
    %47 = vector.shape_cast %46 : vector<1x8x8xf32> to vector<8x8xf32>
    %48 = vector.extract_strided_slice %41 {offsets = [3, 0, 0], sizes = [1, 8, 8], strides = [1, 1, 1]} : vector<4x8x8xf32> to vector<1x8x8xf32>
    %49 = vector.shape_cast %48 : vector<1x8x8xf32> to vector<8x8xf32>
    %50 = tpu.concatenate %43, %45, %47, %49 in 1 : vector<8x8xf32>, vector<8x8xf32>, vector<8x8xf32>, vector<8x8xf32> -> vector<8x32xf32>
    %51 = arith.truncf %50 : vector<8x32xf32> to vector<8x32xbf16>
    %c0_21 = arith.constant 0 : index
    %c0_22 = arith.constant 0 : index
    %52 = vector.load %arg9[%c0_21, %c0_22] : memref<32x32xbf16, #tpu.memory_space<vmem>>, vector<32x32xbf16>
    %cst_23 = arith.constant dense<0.000000e+00> : vector<8x32xf32>
    %53 = tpu.matmul %51, %52, %cst_23 {dimension_numbers = #tpu.dot_dimension_numbers<[1], [0], [0], [1], [0, 0, 1, 1], [], []>} : vector<8x32xbf16>, vector<32x32xbf16>, vector<8x32xf32> -> vector<8x32xf32>
    %c0_24 = arith.constant 0 : index
    %c0_25 = arith.constant 0 : index
    %54 = vector.load %arg10[%c0_24, %c0_25] : memref<1x32xf32, #tpu.memory_space<vmem>>, vector<1x32xf32>
    %55 = vector.broadcast %54 : vector<1x32xf32> to vector<8x32xf32>
    %56 = arith.addf %53, %55 : vector<8x32xf32>
    %c0_26 = arith.constant 0 : index
    %c0_27 = arith.constant 0 : index
    %c0_28 = arith.constant 0 : index
    %57 = vector.load %arg11[%c0_26, %c0_27, %c0_28] : memref<1x8x32xf32, #tpu.memory_space<vmem>>, vector<1x8x32xf32>
    %58 = vector.shape_cast %57 : vector<1x8x32xf32> to vector<8x32xf32>
    %59 = vector.shape_cast %56 : vector<8x32xf32> to vector<1x8x32xf32>
    tpu.vector_store %arg11[%c0_26, %c0_27, %c0_28], %59 {strides = array<i32>} : memref<1x8x32xf32, #tpu.memory_space<vmem>>, vector<1x8x32xf32>,
    return
  }
  func.func @transform_0(%arg0: i32, %arg1: i32) -> (i32, i32, i32) {
    %c0_i32 = arith.constant 0 : i32
    %c0_i32_0 = arith.constant 0 : i32
    %c0_i32_1 = arith.constant 0 : i32
    return %arg0, %c0_i32, %c0_i32_0 : i32, i32, i32
  }
  func.func @transform_1(%arg0: i32, %arg1: i32) -> (i32, i32) {
    %c0_i32 = arith.constant 0 : i32
    %c0_i32_0 = arith.constant 0 : i32
    %c0_i32_1 = arith.constant 0 : i32
    return %c0_i32, %c0_i32_0 : i32, i32
  }
  func.func @transform_2(%arg0: i32, %arg1: i32) -> (i32, i32) {
    %c0_i32 = arith.constant 0 : i32
    %c0_i32_0 = arith.constant 0 : i32
    %c0_i32_1 = arith.constant 0 : i32
    return %c0_i32, %c0_i32_0 : i32, i32
  }
  func.func @transform_3(%arg0: i32, %arg1: i32) -> (i32, i32) {
    %c0_i32 = arith.constant 0 : i32
    %c0_i32_0 = arith.constant 0 : i32
    %c0_i32_1 = arith.constant 0 : i32
    return %c0_i32, %c0_i32_0 : i32, i32
  }
  func.func @transform_4(%arg0: i32, %arg1: i32) -> (i32, i32) {
    %c0_i32 = arith.constant 0 : i32
    %c0_i32_0 = arith.constant 0 : i32
    %c0_i32_1 = arith.constant 0 : i32
    return %c0_i32, %c0_i32_0 : i32, i32
  }
  func.func @transform_5(%arg0: i32, %arg1: i32) -> (i32, i32) {
    %c0_i32 = arith.constant 0 : i32
    %c0_i32_0 = arith.constant 0 : i32
    %c0_i32_1 = arith.constant 0 : i32
    return %c0_i32, %c0_i32_0 : i32, i32
  }
  func.func @transform_6(%arg0: i32, %arg1: i32) -> (i32, i32) {
    %c0_i32 = arith.constant 0 : i32
    %c0_i32_0 = arith.constant 0 : i32
    %c0_i32_1 = arith.constant 0 : i32
    return %c0_i32, %c0_i32_0 : i32, i32
  }
  func.func @transform_7(%arg0: i32, %arg1: i32) -> (i32, i32) {
    %c0_i32 = arith.constant 0 : i32
    %c0_i32_0 = arith.constant 0 : i32
    %c0_i32_1 = arith.constant 0 : i32
    return %c0_i32, %c0_i32_0 : i32, i32
  }
  func.func @transform_8(%arg0: i32, %arg1: i32) -> (i32, i32) {
    %c0_i32 = arith.constant 0 : i32
    %c0_i32_0 = arith.constant 0 : i32
    %c0_i32_1 = arith.constant 0 : i32
    return %c0_i32, %c0_i32_0 : i32, i32
  }
  func.func @transform_9(%arg0: i32, %arg1: i32) -> (i32, i32, i32) {
    %c0_i32 = arith.constant 0 : i32
    %c0_i32_0 = arith.constant 0 : i32
    return %arg0, %arg1, %c0_i32 : i32, i32, i32
  }
  func.func @transform_10(%arg0: i32, %arg1: i32) -> (i32, i32, i32, i32) {
    %c0_i32 = arith.constant 0 : i32
    %c0_i32_0 = arith.constant 0 : i32
    %c0_i32_1 = arith.constant 0 : i32
    return %arg0, %c0_i32, %arg1, %c0_i32_0 : i32, i32, i32, i32
  }
}

</mosaic_0001>

<llo_original>
// kernel: tpu_custom_call.1
$region0: #{tpu_custom_call.1}
  #allocation0 [shape = 'u32[]', space=smem, size = 0x4, offset = 0x4, fixed_abs, tag = 'smem constant byte address 0x4 - core index']
  #allocation1 [shape = 'u32[144,128]{1,0:T(1,128)}', space=vmem, size = 0x12000, scoped, tag = 'internal scratch']
  #allocation2 [shape = 'bf16[4,8,16]{2,1,0:T(8,128)(2,1)}', space=vmem, size = 0x2000, scoped, tag = 'scratch operand']
  #allocation3 [shape = 'bf16[4,16,8]{2,1,0:T(8,128)(2,1)}', space=vmem, size = 0x4000, scoped, tag = 'scratch operand']
  %s0 = inlined_call_operand.hbm [shape: bf16[2,16,32], index: 0, kind: input, shape index: {}]
  %s1 = inlined_call_operand.hbm [shape: bf16[32,32], index: 1, kind: input, shape index: {}]
  %s2 = inlined_call_operand.vmem [shape: f32[1,32], index: 2, kind: input, shape index: {}]
  %s3 = inlined_call_operand.hbm [shape: bf16[32,32], index: 3, kind: input, shape index: {}]
  %s4 = inlined_call_operand.vmem [shape: f32[1,32], index: 4, kind: input, shape index: {}]
  %s5 = inlined_call_operand.hbm [shape: bf16[32,32], index: 5, kind: input, shape index: {}]
  %s6 = inlined_call_operand.vmem [shape: f32[1,32], index: 6, kind: input, shape index: {}]
  %s7 = inlined_call_operand.hbm [shape: bf16[32,32], index: 7, kind: input, shape index: {}]
  %s8 = inlined_call_operand.vmem [shape: f32[1,32], index: 8, kind: input, shape index: {}]
  %s9 = inlined_call_operand.hbm [shape: f32[2,16,32], index: 9, kind: output, shape index: {0}]
  %s10 = inlined_call_operand.hbm [shape: f32[2,4,16,16], index: 10, kind: output, shape index: {1}]
  %11 = xla_tuple %s9, %s10
  %s12 = sld [smem:[#allocation0]]
  $region101: #{tpu_custom_call.1} parent=0
    _
  %s14 = ssub.s32 1, %s12
  %s15 = scalar_select 0, %s14, %s12
  $region1: #{tpu_custom_call.1} parent=0
    #allocation4 [shape = 'u8[8192]{0}', space=vmem, size = 0x2000, scoped, tag = 'input window, operand 0']
    #allocation5 [shape = 's32[2]{0}', space=sflag, size = 0x8, scoped, tag = 'scoped memory for tpu_custom_call.1']
    #allocation6 [shape = 's32[2]{0}', space=sflag, size = 0x8, scoped, tag = 'scoped memory for tpu_custom_call.1']
    #allocation7 [shape = 'u8[8192]{0}', space=vmem, size = 0x2000, scoped, tag = 'input window, operand 1, single buffered']
    #allocation8 [shape = 's32[1]{0}', space=sflag, size = 0x4, scoped, tag = 'scoped memory for tpu_custom_call.1']
    #allocation9 [shape = 'u8[8192]{0}', space=vmem, size = 0x2000, scoped, tag = 'input window, operand 3, single buffered']
    #allocation10 [shape = 'u8[8192]{0}', space=vmem, size = 0x2000, scoped, tag = 'input window, operand 5, single buffered']
    #allocation11 [shape = 's32[1]{0}', space=sflag, size = 0x4, scoped, tag = 'scoped memory for tpu_custom_call.1']
    #allocation12 [shape = 'u8[8192]{0}', space=vmem, size = 0x2000, scoped, tag = 'input window, operand 7, single buffered']
    #allocation13 [shape = 'u8[8192]{0}', space=vmem, size = 0x2000, scoped, tag = 'output window, operand 0']
    #allocation14 [shape = 'u8[32768]{0}', space=vmem, size = 0x8000, scoped, tag = 'output window, operand 1']
    #allocation15 [shape = 's32[2]{0}', space=sflag, size = 0x8, scoped, tag = 'scoped memory for tpu_custom_call.1']
    %16 = vsyncpa [#allocation5], 0
    %s17 = scalar_lea.sflag [#allocation5], 1
    %18 = vsyncpa %s17, 0
    %19 = vsyncpa [#allocation8], 0
    %20 = vsyncpa [#allocation11], 0
    %21 = vsyncpa [#allocation6], 0
    %s22 = scalar_lea.sflag [#allocation6], 1
    %23 = vsyncpa %s22, 0
    %24 = vsyncpa [#allocation15], 0
    %s25 = scalar_lea.sflag [#allocation15], 1
    %26 = vsyncpa %s25, 0
    loop: start=0, step=1, limit=6
    $region2: #{tpu_custom_call.1} parent=1 // loop_pre_header
      _
    $region3: #{tpu_custom_call.1} parent=1 // loop_header
      %s28 = sphi 0, %s32
      %p29 = scmp.ge.s32.totalorder %s28, 6
      %s35 = sphi 0, %s47
      %s36 = sphi 0, %s43
      %s37 = sphi 0, %s35
      %s38 = sphi 0, %s36
      %s39 = sphi 0, %s37
      %s40 = sphi 0, %s38
      %s50 = sphi 0, %s52
      %s53 = sphi 0, %s50
      %s54 = sphi 0, %s53
      %s70 = sphi 0, %s54
      %s74 = sphi 0, %s74
      %s76 = sphi 0, %s74
      %s77 = sphi 0, %s76
      %s91 = sphi 0, %s77
      %s95 = sphi 0, %s95
      %s97 = sphi 0, %s95
      %s98 = sphi 0, %s97
      %s112 = sphi 0, %s98
      %s116 = sphi 0, %s116
      %s118 = sphi 0, %s116
      %s119 = sphi 0, %s118
      %s133 = sphi 0, %s119
      %s137 = sphi 0, %s137
      %s139 = sphi 0, %s137
      %s140 = sphi 0, %s139
      %s154 = sphi 0, %s140
      %s158 = sphi 0, %s158
      %s160 = sphi 0, %s158
      %s161 = sphi 0, %s160
      %s175 = sphi 0, %s161
      %s179 = sphi 0, %s179
      %s181 = sphi 0, %s179
      %s182 = sphi 0, %s181
      %s196 = sphi 0, %s182
      %s200 = sphi 0, %s200
      %s202 = sphi 0, %s200
      %s203 = sphi 0, %s202
      %s217 = sphi 0, %s203
      %s221 = sphi 0, %s221
      %s223 = sphi 0, %s221
      %s224 = sphi 0, %s223
      %s238 = sphi 0, %s224
      %s246 = sphi 0, %s248
      %s249 = sphi 0, %s246
      %s250 = sphi 0, %s249
      %s266 = sphi 0, %s250
      %s274 = sphi 0, %s276
      %s277 = sphi 0, %s274
      %s278 = sphi 0, %s277
      %s294 = sphi 0, %s278
    $region4: #{tpu_custom_call.1} parent=1 // loop_header_branch
      %31 = sbr.rel (%p29) target = $region8
    $region5: #{tpu_custom_call.1} parent=1 // loop_body
      %s33 = ssub.s32 %s28, 1
      %s34 = ssub.s32 %s28, 2
      %s41 = sadd.s32 1, %s36
      %p42 = scmp.ge.s32.totalorder %s41, 2
      %s43 = scalar_select %p42, 0, %s41
      %s44 = sadd.s32 1, %s35
      %s45 = scalar_select %p42, %s44, %s35
      %p46 = scmp.ge.s32.totalorder %s45, 2
      %s47 = scalar_select %p46, 0, %s45
      %s48 = ssub.s32 %s35, %s47
      %p49 = scmp.eq.s32.totalorder %s48, 0
      %s51 = sadd.s32 %s50, 1
      %s52 = scalar_select %p49, %s50, %s51
      %p55 = pneg %p49
      %p56 = scmp.eq.s32.totalorder %s28, 3
      %p57 = por %p55, %p56
      %p58 = scmp.ne.s32.totalorder %s50, %s53
      %p59 = scmp.eq.s32.totalorder %s28, 0
      %p60 = por %p58, %p59
      %p61 = scmp.ne.s32.totalorder %s50, %s53
      %p62 = scmp.eq.s32.totalorder %s33, 3
      %p63 = por %p61, %p62
      %p64 = scmp.ne.s32.totalorder %s53, %s54
      %p65 = scmp.eq.s32.totalorder %s33, 0
      %p66 = por %p64, %p65
      %p67 = scmp.ne.s32.totalorder %s53, %s54
      %p68 = scmp.eq.s32.totalorder %s34, 3
      %p69 = por %p67, %p68
      %p71 = scmp.ne.s32.totalorder %s54, %s70
      %p72 = scmp.eq.s32.totalorder %s34, 0
      %p73 = por %p71, %p72
      %s75 = sadd.s32 %s74, 1
      %p78 = scmp.eq.s32.totalorder %s28, 3
      %p79 = scmp.ne.s32.totalorder %s74, %s76
      %p80 = scmp.eq.s32.totalorder %s28, 0
      %p81 = por %p79, %p80
      %p82 = scmp.ne.s32.totalorder %s74, %s76
      %p83 = scmp.eq.s32.totalorder %s33, 3
      %p84 = por %p82, %p83
      %p85 = scmp.ne.s32.totalorder %s76, %s77
      %p86 = scmp.eq.s32.totalorder %s33, 0
      %p87 = por %p85, %p86
      %p88 = scmp.ne.s32.totalorder %s76, %s77
      %p89 = scmp.eq.s32.totalorder %s34, 3
      %p90 = por %p88, %p89
      %p92 = scmp.ne.s32.totalorder %s77, %s91
      %p93 = scmp.eq.s32.totalorder %s34, 0
      %p94 = por %p92, %p93
      %s96 = sadd.s32 %s95, 1
      %p99 = scmp.eq.s32.totalorder %s28, 3
      %p100 = scmp.ne.s32.totalorder %s95, %s97
      %p101 = scmp.eq.s32.totalorder %s28, 0
      %p102 = por %p100, %p101
      %p103 = scmp.ne.s32.totalorder %s95, %s97
      %p104 = scmp.eq.s32.totalorder %s33, 3
      %p105 = por %p103, %p104
      %p106 = scmp.ne.s32.totalorder %s97, %s98
      %p107 = scmp.eq.s32.totalorder %s33, 0
      %p108 = por %p106, %p107
      %p109 = scmp.ne.s32.totalorder %s97, %s98
      %p110 = scmp.eq.s32.totalorder %s34, 3
      %p111 = por %p109, %p110
      %p113 = scmp.ne.s32.totalorder %s98, %s112
      %p114 = scmp.eq.s32.totalorder %s34, 0
      %p115 = por %p113, %p114
      %s117 = sadd.s32 %s116, 1
      %p120 = scmp.eq.s32.totalorder %s28, 3
      %p121 = scmp.ne.s32.totalorder %s116, %s118
      %p122 = scmp.eq.s32.totalorder %s28, 0
      %p123 = por %p121, %p122
      %p124 = scmp.ne.s32.totalorder %s116, %s118
      %p125 = scmp.eq.s32.totalorder %s33, 3
      %p126 = por %p124, %p125
      %p127 = scmp.ne.s32.totalorder %s118, %s119
      %p128 = scmp.eq.s32.totalorder %s33, 0
      %p129 = por %p127, %p128
      %p130 = scmp.ne.s32.totalorder %s118, %s119
      %p131 = scmp.eq.s32.totalorder %s34, 3
      %p132 = por %p130, %p131
      %p134 = scmp.ne.s32.totalorder %s119, %s133
      %p135 = scmp.eq.s32.totalorder %s34, 0
      %p136 = por %p134, %p135
      %s138 = sadd.s32 %s137, 1
      %p141 = scmp.eq.s32.totalorder %s28, 3
      %p142 = scmp.ne.s32.totalorder %s137, %s139
      %p143 = scmp.eq.s32.totalorder %s28, 0
      %p144 = por %p142, %p143
      %p145 = scmp.ne.s32.totalorder %s137, %s139
      %p146 = scmp.eq.s32.totalorder %s33, 3
      %p147 = por %p145, %p146
      %p148 = scmp.ne.s32.totalorder %s139, %s140
      %p149 = scmp.eq.s32.totalorder %s33, 0
      %p150 = por %p148, %p149
      %p151 = scmp.ne.s32.totalorder %s139, %s140
      %p152 = scmp.eq.s32.totalorder %s34, 3
      %p153 = por %p151, %p152
      %p155 = scmp.ne.s32.totalorder %s140, %s154
      %p156 = scmp.eq.s32.totalorder %s34, 0
      %p157 = por %p155, %p156
      %s159 = sadd.s32 %s158, 1
      %p162 = scmp.eq.s32.totalorder %s28, 3
      %p163 = scmp.ne.s32.totalorder %s158, %s160
      %p164 = scmp.eq.s32.totalorder %s28, 0
      %p165 = por %p163, %p164
      %p166 = scmp.ne.s32.totalorder %s158, %s160
      %p167 = scmp.eq.s32.totalorder %s33, 3
      %p168 = por %p166, %p167
      %p169 = scmp.ne.s32.totalorder %s160, %s161
      %p170 = scmp.eq.s32.totalorder %s33, 0
      %p171 = por %p169, %p170
      %p172 = scmp.ne.s32.totalorder %s160, %s161
      %p173 = scmp.eq.s32.totalorder %s34, 3
      %p174 = por %p172, %p173
      %p176 = scmp.ne.s32.totalorder %s161, %s175
      %p177 = scmp.eq.s32.totalorder %s34, 0
      %p178 = por %p176, %p177
      %s180 = sadd.s32 %s179, 1
      %p183 = scmp.eq.s32.totalorder %s28, 3
      %p184 = scmp.ne.s32.totalorder %s179, %s181
      %p185 = scmp.eq.s32.totalorder %s28, 0
      %p186 = por %p184, %p185
      %p187 = scmp.ne.s32.totalorder %s179, %s181
      %p188 = scmp.eq.s32.totalorder %s33, 3
      %p189 = por %p187, %p188
      %p190 = scmp.ne.s32.totalorder %s181, %s182
      %p191 = scmp.eq.s32.totalorder %s33, 0
      %p192 = por %p190, %p191
      %p193 = scmp.ne.s32.totalorder %s181, %s182
      %p194 = scmp.eq.s32.totalorder %s34, 3
      %p195 = por %p193, %p194
      %p197 = scmp.ne.s32.totalorder %s182, %s196
      %p198 = scmp.eq.s32.totalorder %s34, 0
      %p199 = por %p197, %p198
      %s201 = sadd.s32 %s200, 1
      %p204 = scmp.eq.s32.totalorder %s28, 3
      %p205 = scmp.ne.s32.totalorder %s200, %s202
      %p206 = scmp.eq.s32.totalorder %s28, 0
      %p207 = por %p205, %p206
      %p208 = scmp.ne.s32.totalorder %s200, %s202
      %p209 = scmp.eq.s32.totalorder %s33, 3
      %p210 = por %p208, %p209
      %p211 = scmp.ne.s32.totalorder %s202, %s203
      %p212 = scmp.eq.s32.totalorder %s33, 0
      %p213 = por %p211, %p212
      %p214 = scmp.ne.s32.totalorder %s202, %s203
      %p215 = scmp.eq.s32.totalorder %s34, 3
      %p216 = por %p214, %p215
      %p218 = scmp.ne.s32.totalorder %s203, %s217
      %p219 = scmp.eq.s32.totalorder %s34, 0
      %p220 = por %p218, %p219
      %s222 = sadd.s32 %s221, 1
      %p225 = scmp.eq.s32.totalorder %s28, 3
      %p226 = scmp.ne.s32.totalorder %s221, %s223
      %p227 = scmp.eq.s32.totalorder %s28, 0
      %p228 = por %p226, %p227
      %p229 = scmp.ne.s32.totalorder %s221, %s223
      %p230 = scmp.eq.s32.totalorder %s33, 3
      %p231 = por %p229, %p230
      %p232 = scmp.ne.s32.totalorder %s223, %s224
      %p233 = scmp.eq.s32.totalorder %s33, 0
      %p234 = por %p232, %p233
      %p235 = scmp.ne.s32.totalorder %s223, %s224
      %p236 = scmp.eq.s32.totalorder %s34, 3
      %p237 = por %p235, %p236
      %p239 = scmp.ne.s32.totalorder %s224, %s238
      %p240 = scmp.eq.s32.totalorder %s34, 0
      %p241 = por %p239, %p240
      %s242 = ssub.s32 %s35, %s47
      %s243 = ssub.s32 %s36, %s43
      %s244 = sor.u32 %s242, %s243
      %p245 = scmp.eq.s32.totalorder %s244, 0
      %s247 = sadd.s32 %s246, 1
      %s248 = scalar_select %p245, %s246, %s247
      %p251 = pneg %p245
      %p252 = scmp.eq.s32.totalorder %s28, 3
      %p253 = por %p251, %p252
      %p254 = scmp.ne.s32.totalorder %s246, %s249
      %p255 = scmp.eq.s32.totalorder %s28, 0
      %p256 = por %p254, %p255
      %p257 = scmp.ne.s32.totalorder %s246, %s249
      %p258 = scmp.eq.s32.totalorder %s33, 3
      %p259 = por %p257, %p258
      %p260 = scmp.ne.s32.totalorder %s249, %s250
      %p261 = scmp.eq.s32.totalorder %s33, 0
      %p262 = por %p260, %p261
      %p263 = scmp.ne.s32.totalorder %s249, %s250
      %p264 = scmp.eq.s32.totalorder %s34, 3
      %p265 = por %p263, %p264
      %p267 = scmp.ne.s32.totalorder %s250, %s266
      %p268 = scmp.eq.s32.totalorder %s34, 0
      %p269 = por %p267, %p268
      %s270 = ssub.s32 %s35, %s47
      %s271 = ssub.s32 %s36, %s43
      %s272 = sor.u32 %s270, %s271
      %p273 = scmp.eq.s32.totalorder %s272, 0
      %s275 = sadd.s32 %s274, 1
      %s276 = scalar_select %p273, %s274, %s275
      %p279 = pneg %p273
      %p280 = scmp.eq.s32.totalorder %s28, 3
      %p281 = por %p279, %p280
      %p282 = scmp.ne.s32.totalorder %s274, %s277
      %p283 = scmp.eq.s32.totalorder %s28, 0
      %p284 = por %p282, %p283
      %p285 = scmp.ne.s32.totalorder %s274, %s277
      %p286 = scmp.eq.s32.totalorder %s33, 3
      %p287 = por %p285, %p286
      %p288 = scmp.ne.s32.totalorder %s277, %s278
      %p289 = scmp.eq.s32.totalorder %s33, 0
      %p290 = por %p288, %p289
      %p291 = scmp.ne.s32.totalorder %s277, %s278
      %p292 = scmp.eq.s32.totalorder %s34, 3
      %p293 = por %p291, %p292
      %p295 = scmp.ne.s32.totalorder %s278, %s294
      %p296 = scmp.eq.s32.totalorder %s34, 0
      %p297 = por %p295, %p296
      %p298 = scmp.le.s32.totalorder 1, %s28
      %p299 = scmp.lt.s32.totalorder %s28, 5
      %p300 = pnand %p298, %p299
      %p301 = pneg %p300
      // Predicated region
      $region9: #{tpu_custom_call.1} parent=5 // pred_check
        _
      $region10: #{tpu_custom_call.1} parent=5 // pred_check_branch
        %303 = sbr.rel (%p300) target = $region12
      $region11: #{tpu_custom_call.1} parent=5 // pred_region
        %s304 = ssub.s32 %s28, 1
        // Predicated region
        $region13: #{tpu_custom_call.1} parent=11 // pred_check
          %p305 = pneg %p87
        $region14: #{tpu_custom_call.1} parent=11 // pred_check_branch
          %307 = sbr.rel (%p305) target = $region16
        $region15: #{tpu_custom_call.1} parent=11 // pred_region
          %s309 = ssub.s32 256, 256
          %310 = vsyncadd [#allocation8], %s309
          %s311 = sshll.u32 [#allocation7], 4
          %s312 = int_to_ptr.vmem [resolvable:$true] %s311
          %317 = dma.hbm_to_vmem [thread:$0]  %s1, 256, %s312, [#allocation8], 64, 64, 4
        $region16: #{tpu_custom_call.1} parent=11 // pred_fallthru
          _
        // Predicated region
        $region17: #{tpu_custom_call.1} parent=11 // pred_check
          %p318 = pneg %p108
        $region18: #{tpu_custom_call.1} parent=11 // pred_check_branch
          %320 = sbr.rel (%p318) target = $region20
        $region19: #{tpu_custom_call.1} parent=11 // pred_region
          _
        $region20: #{tpu_custom_call.1} parent=11 // pred_fallthru
          _
        // Predicated region
        $region21: #{tpu_custom_call.1} parent=11 // pred_check
          %p321 = pneg %p129
        $region22: #{tpu_custom_call.1} parent=11 // pred_check_branch
          %323 = sbr.rel (%p321) target = $region24
        $region23: #{tpu_custom_call.1} parent=11 // pred_region
          %s325 = ssub.s32 256, 256
          %326 = vsyncadd [#allocation8], %s325
          %s327 = sshll.u32 [#allocation9], 4
          %s328 = int_to_ptr.vmem [resolvable:$true] %s327
          %333 = dma.hbm_to_vmem [thread:$0]  %s3, 256, %s328, [#allocation8], 64, 64, 4
        $region24: #{tpu_custom_call.1} parent=11 // pred_fallthru
          _
        // Predicated region
        $region25: #{tpu_custom_call.1} parent=11 // pred_check
          %p334 = pneg %p150
        $region26: #{tpu_custom_call.1} parent=11 // pred_check_branch
          %336 = sbr.rel (%p334) target = $region28
        $region27: #{tpu_custom_call.1} parent=11 // pred_region
          _
        $region28: #{tpu_custom_call.1} parent=11 // pred_fallthru
          _
        // Predicated region
        $region29: #{tpu_custom_call.1} parent=11 // pred_check
          %p337 = pneg %p171
        $region30: #{tpu_custom_call.1} parent=11 // pred_check_branch
          %339 = sbr.rel (%p337) target = $region32
        $region31: #{tpu_custom_call.1} parent=11 // pred_region
          %s341 = ssub.s32 256, 256
          %342 = vsyncadd [#allocation11], %s341
          %s343 = sshll.u32 [#allocation10], 4
          %s344 = int_to_ptr.vmem [resolvable:$true] %s343
          %349 = dma.hbm_to_vmem [thread:$0]  %s5, 256, %s344, [#allocation11], 64, 64, 4
        $region32: #{tpu_custom_call.1} parent=11 // pred_fallthru
          _
        // Predicated region
        $region33: #{tpu_custom_call.1} parent=11 // pred_check
          %p350 = pneg %p192
        $region34: #{tpu_custom_call.1} parent=11 // pred_check_branch
          %352 = sbr.rel (%p350) target = $region36
        $region35: #{tpu_custom_call.1} parent=11 // pred_region
          _
        $region36: #{tpu_custom_call.1} parent=11 // pred_fallthru
          _
        // Predicated region
        $region37: #{tpu_custom_call.1} parent=11 // pred_check
          %p353 = pneg %p213
        $region38: #{tpu_custom_call.1} parent=11 // pred_check_branch
          %355 = sbr.rel (%p353) target = $region40
        $region39: #{tpu_custom_call.1} parent=11 // pred_region
          %s357 = ssub.s32 256, 256
          %358 = vsyncadd [#allocation11], %s357
          %s359 = sshll.u32 [#allocation12], 4
          %s360 = int_to_ptr.vmem [resolvable:$true] %s359
          %365 = dma.hbm_to_vmem [thread:$0]  %s7, 256, %s360, [#allocation11], 64, 64, 4
        $region40: #{tpu_custom_call.1} parent=11 // pred_fallthru
          _
        // Predicated region
        $region41: #{tpu_custom_call.1} parent=11 // pred_check
          %p366 = pneg %p234
        $region42: #{tpu_custom_call.1} parent=11 // pred_check_branch
          %368 = sbr.rel (%p366) target = $region44
        $region43: #{tpu_custom_call.1} parent=11 // pred_region
          _
        $region44: #{tpu_custom_call.1} parent=11 // pred_fallthru
          _
      $region12: #{tpu_custom_call.1} parent=5 // pred_fallthru
        _
      %p369 = scmp.lt.s32.totalorder %s28, 4
      // Predicated region
      $region45: #{tpu_custom_call.1} parent=5 // pred_check
        %p370 = pneg %p369
      $region46: #{tpu_custom_call.1} parent=5 // pred_check_branch
        %372 = sbr.rel (%p370) target = $region48
      $region47: #{tpu_custom_call.1} parent=5 // pred_region
        // Predicated region
        $region49: #{tpu_custom_call.1} parent=47 // pred_check
          %p373 = pneg %p60
        $region50: #{tpu_custom_call.1} parent=47 // pred_check_branch
          %375 = sbr.rel (%p373) target = $region52
        $region51: #{tpu_custom_call.1} parent=47 // pred_region
          %s376 = sand.u32 %s50, 1
          %s377 = scalar_lea.sflag [#allocation5], %s376
          %s378 = sand.u32 %s50, 1
          %s379 = smul.addr %s378, 8
          %s380 = scalar_lea.vmem [#allocation4], %s379
          %s382 = ssub.s32 128, 128
          %383 = vsyncadd %s377, %s382
          %s384 = smul.addr %s35, 2
          %s385 = smul.addr %s384, 64
          %s386 = scalar_lea.hbm %s0, %s385
          %s387 = sshll.u32 %s380, 4
          %s388 = int_to_ptr.vmem [resolvable:$true] %s387
          %393 = dma.hbm_to_vmem [thread:$0]  %s386, 128, %s388, %s377, 64, 64, 4
        $region52: #{tpu_custom_call.1} parent=47 // pred_fallthru
          _
      $region48: #{tpu_custom_call.1} parent=5 // pred_fallthru
        _
      %p394 = scmp.le.s32.totalorder 1, %s28
      %p395 = scmp.lt.s32.totalorder %s28, 5
      %p396 = pnand %p394, %p395
      %p397 = pneg %p396
      // Predicated region
      $region53: #{tpu_custom_call.1} parent=5 // pred_check
        _
      $region54: #{tpu_custom_call.1} parent=5 // pred_check_branch
        %399 = sbr.rel (%p396) target = $region56
      $region55: #{tpu_custom_call.1} parent=5 // pred_region
        %s400 = ssub.s32 %s28, 1
        %s401 = sand.u32 %s53, 1
        %s402 = scalar_lea.sflag [#allocation5], %s401
        %s403 = sand.u32 %s53, 1
        %s404 = smul.addr %s403, 8
        %s405 = scalar_lea.vmem [#allocation4], %s404
        // Predicated region
        $region57: #{tpu_custom_call.1} parent=55 // pred_check
          %p406 = pneg %p66
        $region58: #{tpu_custom_call.1} parent=55 // pred_check_branch
          %408 = sbr.rel (%p406) target = $region60
        $region59: #{tpu_custom_call.1} parent=55 // pred_region
          %409 = dma.done %s402, 128
        $region60: #{tpu_custom_call.1} parent=55 // pred_fallthru
          _
        // Predicated region
        $region61: #{tpu_custom_call.1} parent=55 // pred_check
          %p410 = pneg %p87
        $region62: #{tpu_custom_call.1} parent=55 // pred_check_branch
          %412 = sbr.rel (%p410) target = $region64
        $region63: #{tpu_custom_call.1} parent=55 // pred_region
          %413 = dma.done [#allocation8], 256
        $region64: #{tpu_custom_call.1} parent=55 // pred_fallthru
          _
        // Predicated region
        $region65: #{tpu_custom_call.1} parent=55 // pred_check
          %p414 = pneg %p129
        $region66: #{tpu_custom_call.1} parent=55 // pred_check_branch
          %416 = sbr.rel (%p414) target = $region68
        $region67: #{tpu_custom_call.1} parent=55 // pred_region
          %417 = dma.done [#allocation8], 256
        $region68: #{tpu_custom_call.1} parent=55 // pred_fallthru
          _
        // Predicated region
        $region69: #{tpu_custom_call.1} parent=55 // pred_check
          %p418 = pneg %p171
        $region70: #{tpu_custom_call.1} parent=55 // pred_check_branch
          %420 = sbr.rel (%p418) target = $region72
        $region71: #{tpu_custom_call.1} parent=55 // pred_region
          %421 = dma.done [#allocation11], 256
        $region72: #{tpu_custom_call.1} parent=55 // pred_fallthru
          _
        // Predicated region
        $region73: #{tpu_custom_call.1} parent=55 // pred_check
          %p422 = pneg %p213
        $region74: #{tpu_custom_call.1} parent=55 // pred_check_branch
          %424 = sbr.rel (%p422) target = $region76
        $region75: #{tpu_custom_call.1} parent=55 // pred_region
          %425 = dma.done [#allocation11], 256
        $region76: #{tpu_custom_call.1} parent=55 // pred_fallthru
          _
        %s426 = sand.u32 %s53, 1
        %s427 = scalar_lea.sflag [#allocation5], %s426
        %s428 = sand.u32 %s53, 1
        %s429 = smul.addr %s428, 8
        %s430 = scalar_lea.vmem [#allocation4], %s429
        %p431 = pneg %p66
        %p432 = pneg %p63
        %p433 = pneg %p87
        %p434 = pneg %p84
        %p435 = pneg %p108
        %p436 = pneg %p105
        %p437 = pneg %p129
        %p438 = pneg %p126
        %p439 = pneg %p150
        %p440 = pneg %p147
        %p441 = pneg %p171
        %p442 = pneg %p168
        %p443 = pneg %p192
        %p444 = pneg %p189
        %p445 = pneg %p213
        %p446 = pneg %p210
        %p447 = pneg %p234
        %p448 = pneg %p231
        %p449 = pneg %p262
        %p450 = pneg %p259
        %s451 = sand.u32 %s249, 1
        %s452 = scalar_lea.sflag [#allocation6], %s451
        %s453 = sand.u32 %s249, 1
        %s454 = smul.addr %s453, 8
        %s455 = scalar_lea.vmem [#allocation13], %s454
        %p456 = pneg %p290
        %p457 = pneg %p287
        %s458 = sand.u32 %s277, 1
        %s459 = scalar_lea.sflag [#allocation15], %s458
        %s460 = sand.u32 %s277, 1
        %s461 = smul.addr %s460, 32
        %s462 = scalar_lea.vmem [#allocation14], %s461
        %p464 = scmp.eq.s32.totalorder %s38, 0
        // Predicated region
        $region77: #{tpu_custom_call.1} parent=55 // pred_check
          %p465 = pneg %p464
        $region78: #{tpu_custom_call.1} parent=55 // pred_check_branch
          %467 = sbr.rel (%p465) target = $region80
        $region79: #{tpu_custom_call.1} parent=55 // pred_region
          %v468 = vld [vmem:[%s405] sm:$0xf]
          %v469 = vld [vmem:[%s405 + $0x4] sm:$0xf]
          %v470 = vld [vmem:[#allocation9] sm:$0xf]
          %v471 = vld [vmem:[#allocation9 + $0x4] sm:$0xf]
          %v472 = vld [vmem:[#allocation9 + $0x8] sm:$0xf]
          %v473 = vld [vmem:[#allocation9 + $0xc] sm:$0xf]
          %v474 = vld [vmem:[%s4] sm:$0x1]
          %v476 = vlaneseq
          %v477 = vshrl.u32 %v476, 7
          %v478 = vsub.s32 0, %v477
          %v479 = vrot.slane %v474, %v478
          %v483 = vunpack.c.l.b16 %v468
          %v484 = vunpack.c.l.b16 %v469
          %v485 = vpack.c.b16 %v484, %v483
          %v490 = vunpack.c.l.b16 %v470
          %v491 = vunpack.c.l.b16 %v471
          %v492 = vunpack.c.l.b16 %v472
          %v493 = vunpack.c.l.b16 %v473
          %v494 = vpack.c.b16 %v491, %v490
          %v495 = vpack.c.b16 %v493, %v492
          %vm498 = vcmask 261120
          %v500 = vsel %vm498, %v485, 0
          %502 = vmatprep.subr.bf16.mxu0 0
          %503 = vmatpush1.bf16.msra.mxu0 0
          %504 = vmatprep.subr.bf16.mxu0 0
          %505 = vmatpush1.bf16.msra.mxu0 0
          %506 = vmatprep.subr.bf16.mxu0 0
          %507 = vmatpush1.bf16.msra.mxu0 0
          %508 = vmatprep.subr.bf16.mxu0 0
          %509 = vmatpush1.bf16.msra.mxu0 0
          %510 = vmatprep.subr.bf16.mxu0 0
          %511 = vmatpush1.bf16.msra.mxu0 0
          %512 = vmatprep.subr.bf16.mxu0 0
          %513 = vmatpush1.bf16.msra.mxu0 0
          %514 = vmatprep.subr.bf16.mxu0 0
          %515 = vmatpush1.bf16.msra.mxu0 %v495
          %516 = vmatprep.subr.bf16.mxu0 0
          %517 = vmatpush1.bf16.msra.mxu0 %v494
          %518 = vmatprep.subr.bf16.mxu0 0
          %519 = vmatpush2.bf16.msra.mxu0 0
          %520 = vmatprep.subr.bf16.mxu0 0
          %521 = vmatpush2.bf16.msra.mxu0 0
          %522 = vmatprep.subr.bf16.mxu0 0
          %523 = vmatpush2.bf16.msra.mxu0 0
          %524 = vmatprep.subr.bf16.mxu0 0
          %525 = vmatpush2.bf16.msra.mxu0 0
          %526 = vmatprep.subr.bf16.mxu0 0
          %527 = vmatpush2.bf16.msra.mxu0 0
          %528 = vmatprep.subr.bf16.mxu0 0
          %529 = vmatpush2.bf16.msra.mxu0 0
          %530 = vmatprep.subr.bf16.mxu0 0
          %531 = vmatpush2.bf16.msra.mxu0 0
          %532 = vmatprep.subr.bf16.mxu0 0
          %533 = vmatpush2.bf16.msra.mxu0 0
          %534 = vmatprep.mubr.bf16.mxu0 0
          %535 = vmatmul.mubr.bf16.gmra.mxu0 %v500
          %v536 = vpop.f32.mrf.mxu0
          %v537 = vadd.f32 %v479, %v536
          %v538 = vpop.f32.mrf.mxu0
          %v539 = vpop.f32.mrf.mxu0
          %v540 = vadd.f32 %v479, %v539
          %v541 = vpop.f32.mrf.mxu0
          %542 = vdwg.mxu0
          %v543 = vld [vmem:[#allocation10] sm:$0xf]
          %v544 = vld [vmem:[#allocation10 + $0x4] sm:$0xf]
          %v545 = vld [vmem:[#allocation10 + $0x8] sm:$0xf]
          %v546 = vld [vmem:[#allocation10 + $0xc] sm:$0xf]
          %v547 = vld [vmem:[%s6] sm:$0x1]
          %v549 = vlaneseq
          %v550 = vshrl.u32 %v549, 7
          %v551 = vsub.s32 0, %v550
          %v552 = vrot.slane %v547, %v551
          %v558 = vunpack.c.l.b16 %v543
          %v559 = vunpack.c.l.b16 %v544
          %v560 = vunpack.c.l.b16 %v545
          %v561 = vunpack.c.l.b16 %v546
          %v562 = vpack.c.b16 %v559, %v558
          %v563 = vpack.c.b16 %v561, %v560
          %566 = vmatprep.subr.bf16.mxu0 0
          %567 = vmatpush1.bf16.msra.mxu0 0
          %568 = vmatprep.subr.bf16.mxu0 0
          %569 = vmatpush1.bf16.msra.mxu0 0
          %570 = vmatprep.subr.bf16.mxu0 0
          %571 = vmatpush1.bf16.msra.mxu0 0
          %572 = vmatprep.subr.bf16.mxu0 0
          %573 = vmatpush1.bf16.msra.mxu0 0
          %574 = vmatprep.subr.bf16.mxu0 0
          %575 = vmatpush1.bf16.msra.mxu0 0
          %576 = vmatprep.subr.bf16.mxu0 0
          %577 = vmatpush1.bf16.msra.mxu0 0
          %578 = vmatprep.subr.bf16.mxu0 0
          %579 = vmatpush1.bf16.msra.mxu0 %v563
          %580 = vmatprep.subr.bf16.mxu0 0
          %581 = vmatpush1.bf16.msra.mxu0 %v562
          %582 = vmatprep.subr.bf16.mxu0 0
          %583 = vmatpush2.bf16.msra.mxu0 0
          %584 = vmatprep.subr.bf16.mxu0 0
          %585 = vmatpush2.bf16.msra.mxu0 0
          %586 = vmatprep.subr.bf16.mxu0 0
          %587 = vmatpush2.bf16.msra.mxu0 0
          %588 = vmatprep.subr.bf16.mxu0 0
          %589 = vmatpush2.bf16.msra.mxu0 0
          %590 = vmatprep.subr.bf16.mxu0 0
          %591 = vmatpush2.bf16.msra.mxu0 0
          %592 = vmatprep.subr.bf16.mxu0 0
          %593 = vmatpush2.bf16.msra.mxu0 0
          %594 = vmatprep.subr.bf16.mxu0 0
          %595 = vmatpush2.bf16.msra.mxu0 0
          %596 = vmatprep.subr.bf16.mxu0 0
          %597 = vmatpush2.bf16.msra.mxu0 0
          %598 = vmatprep.mubr.bf16.mxu0 0
          %599 = vmatmul.mubr.bf16.gmra.mxu0 %v500
          %v600 = vpop.f32.mrf.mxu0
          %v601 = vadd.f32 %v552, %v600
          %v602 = vpop.f32.mrf.mxu0
          %v603 = vpop.f32.mrf.mxu0
          %v604 = vadd.f32 %v552, %v603
          %v605 = vpop.f32.mrf.mxu0
          %606 = vdwg.mxu0
          %607 = vxpose.xlu0.b32.start [1/16] %v537, 128
          %608 = vxpose.xlu0.b32.cont [2/16] %v540, 128
          %609 = vxpose.xlu0.b32.cont [3/16] 0.0, 128
          %610 = vxpose.xlu0.b32.cont [4/16] 0.0, 128
          %611 = vxpose.xlu0.b32.cont [5/16] 0.0, 128
          %612 = vxpose.xlu0.b32.cont [6/16] 0.0, 128
          %613 = vxpose.xlu0.b32.cont [7/16] 0.0, 128
          %614 = vxpose.xlu0.b32.cont [8/16] 0.0, 128
          %615 = vxpose.xlu0.b32.cont [9/16] 0.0, 128
          %616 = vxpose.xlu0.b32.cont [10/16] 0.0, 128
          %617 = vxpose.xlu0.b32.cont [11/16] 0.0, 128
          %618 = vxpose.xlu0.b32.cont [12/16] 0.0, 128
          %619 = vxpose.xlu0.b32.cont [13/16] 0.0, 128
          %620 = vxpose.xlu0.b32.cont [14/16] 0.0, 128
          %621 = vxpose.xlu0.b32.cont [15/16] 0.0, 128
          %622 = vxpose.xlu0.b32.end [16/16] 0.0, 128
          %v623 = vpop.trf.xlu0
          %v624 = vpop.trf.xlu0
          %v625 = vpop.trf.xlu0
          %v626 = vpop.trf.xlu0
          %v627 = vpop.trf.xlu0
          %v628 = vpop.trf.xlu0
          %v629 = vpop.trf.xlu0
          %v630 = vpop.trf.xlu0
          %v631 = vpop.trf.xlu0
          %v632 = vpop.trf.xlu0
          %v633 = vpop.trf.xlu0
          %v634 = vpop.trf.xlu0
          %v635 = vpop.trf.xlu0
          %v636 = vpop.trf.xlu0
          %v637 = vpop.trf.xlu0
          %v638 = vpop.trf.xlu0
          %v639 = vpack.c.bf16 %v623, %v623
          %vm640 = vcmask 125952
          %641 = vst.msk [vmem:[#allocation2] sm:$0xf] %vm640, %v639
          %v642 = vpack.c.bf16 %v604, %v601
          %v644 = vunpack.c.l.b16 %v642
          %v645 = vunpack.c.h.b16 %v642
          %v646 = vpack.c.b16 %v644, %v644
          %v647 = vpack.c.b16 %v645, %v645
          %vm650 = vcmask 60416
          %651 = vst.msk [vmem:[#allocation3] sm:$0xf] %vm650, %v646
          %652 = vst.msk [vmem:[#allocation3 + $0x4] sm:$0xf] %vm650, %v647
          %655 = vrot.lane.b32.xlu0 %v537, 120
          %v656 = vpop.permute.xlu0 %655
          %657 = vrot.lane.b32.xlu0 %v540, 120
          %v658 = vpop.permute.xlu0 %657
          %661 = vxpose.xlu0.b32.start [1/16] %v656, 128
          %662 = vxpose.xlu0.b32.cont [2/16] %v658, 128
          %663 = vxpose.xlu0.b32.cont [3/16] 0.0, 128
          %664 = vxpose.xlu0.b32.cont [4/16] 0.0, 128
          %665 = vxpose.xlu0.b32.cont [5/16] 0.0, 128
          %666 = vxpose.xlu0.b32.cont [6/16] 0.0, 128
          %667 = vxpose.xlu0.b32.cont [7/16] 0.0, 128
          %668 = vxpose.xlu0.b32.cont [8/16] 0.0, 128
          %669 = vxpose.xlu0.b32.cont [9/16] 0.0, 128
          %670 = vxpose.xlu0.b32.cont [10/16] 0.0, 128
          %671 = vxpose.xlu0.b32.cont [11/16] 0.0, 128
          %672 = vxpose.xlu0.b32.cont [12/16] 0.0, 128
          %673 = vxpose.xlu0.b32.cont [13/16] 0.0, 128
          %674 = vxpose.xlu0.b32.cont [14/16] 0.0, 128
          %675 = vxpose.xlu0.b32.cont [15/16] 0.0, 128
          %676 = vxpose.xlu0.b32.end [16/16] 0.0, 128
          %v677 = vpop.trf.xlu0
          %v678 = vpop.trf.xlu0
          %v679 = vpop.trf.xlu0
          %v680 = vpop.trf.xlu0
          %v681 = vpop.trf.xlu0
          %v682 = vpop.trf.xlu0
          %v683 = vpop.trf.xlu0
          %v684 = vpop.trf.xlu0
          %v685 = vpop.trf.xlu0
          %v686 = vpop.trf.xlu0
          %v687 = vpop.trf.xlu0
          %v688 = vpop.trf.xlu0
          %v689 = vpop.trf.xlu0
          %v690 = vpop.trf.xlu0
          %v691 = vpop.trf.xlu0
          %v692 = vpop.trf.xlu0
          %v693 = vpack.c.bf16 %v677, %v677
          %s694 = scalar_lea.vmem [#allocation2], 4
          %695 = vst.msk [vmem:[%s694] sm:$0xf] %vm640, %v693
          %696 = vrot.lane.b32.xlu0 %v646, 120
          %v697 = vpop.permute.xlu0 %696
          %698 = vrot.lane.b32.xlu0 %v647, 120
          %v699 = vpop.permute.xlu0 %698
          %s702 = scalar_lea.vmem [#allocation3], 8
          %703 = vst.msk [vmem:[%s702] sm:$0xf] %vm650, %v697
          %704 = vst.msk [vmem:[%s702 + $0x4] sm:$0xf] %vm650, %v699
          %705 = vrot.lane.b32.xlu0 %v537, 112
          %v706 = vpop.permute.xlu0 %705
          %707 = vrot.lane.b32.xlu0 %v540, 112
          %v708 = vpop.permute.xlu0 %707
          %711 = vxpose.xlu0.b32.start [1/16] %v706, 128
          %712 = vxpose.xlu0.b32.cont [2/16] %v708, 128
          %713 = vxpose.xlu0.b32.cont [3/16] 0.0, 128
          %714 = vxpose.xlu0.b32.cont [4/16] 0.0, 128
          %715 = vxpose.xlu0.b32.cont [5/16] 0.0, 128
          %716 = vxpose.xlu0.b32.cont [6/16] 0.0, 128
          %717 = vxpose.xlu0.b32.cont [7/16] 0.0, 128
          %718 = vxpose.xlu0.b32.cont [8/16] 0.0, 128
          %719 = vxpose.xlu0.b32.cont [9/16] 0.0, 128
          %720 = vxpose.xlu0.b32.cont [10/16] 0.0, 128
          %721 = vxpose.xlu0.b32.cont [11/16] 0.0, 128
          %722 = vxpose.xlu0.b32.cont [12/16] 0.0, 128
          %723 = vxpose.xlu0.b32.cont [13/16] 0.0, 128
          %724 = vxpose.xlu0.b32.cont [14/16] 0.0, 128
          %725 = vxpose.xlu0.b32.cont [15/16] 0.0, 128
          %726 = vxpose.xlu0.b32.end [16/16] 0.0, 128
          %v727 = vpop.trf.xlu0
          %v728 = vpop.trf.xlu0
          %v729 = vpop.trf.xlu0
          %v730 = vpop.trf.xlu0
          %v731 = vpop.trf.xlu0
          %v732 = vpop.trf.xlu0
          %v733 = vpop.trf.xlu0
          %v734 = vpop.trf.xlu0
          %v735 = vpop.trf.xlu0
          %v736 = vpop.trf.xlu0
          %v737 = vpop.trf.xlu0
          %v738 = vpop.trf.xlu0
          %v739 = vpop.trf.xlu0
          %v740 = vpop.trf.xlu0
          %v741 = vpop.trf.xlu0
          %v742 = vpop.trf.xlu0
          %v743 = vpack.c.bf16 %v727, %v727
          %s744 = scalar_lea.vmem [#allocation2], 8
          %745 = vst.msk [vmem:[%s744] sm:$0xf] %vm640, %v743
          %746 = vrot.lane.b32.xlu0 %v646, 112
          %v747 = vpop.permute.xlu0 %746
          %748 = vrot.lane.b32.xlu0 %v647, 112
          %v749 = vpop.permute.xlu0 %748
          %s752 = scalar_lea.vmem [#allocation3], 16
          %753 = vst.msk [vmem:[%s752] sm:$0xf] %vm650, %v747
          %754 = vst.msk [vmem:[%s752 + $0x4] sm:$0xf] %vm650, %v749
          %755 = vrot.lane.b32.xlu0 %v537, 104
          %v756 = vpop.permute.xlu0 %755
          %757 = vrot.lane.b32.xlu0 %v540, 104
          %v758 = vpop.permute.xlu0 %757
          %761 = vxpose.xlu0.b32.start [1/16] %v756, 128
          %762 = vxpose.xlu0.b32.cont [2/16] %v758, 128
          %763 = vxpose.xlu0.b32.cont [3/16] 0.0, 128
          %764 = vxpose.xlu0.b32.cont [4/16] 0.0, 128
          %765 = vxpose.xlu0.b32.cont [5/16] 0.0, 128
          %766 = vxpose.xlu0.b32.cont [6/16] 0.0, 128
          %767 = vxpose.xlu0.b32.cont [7/16] 0.0, 128
          %768 = vxpose.xlu0.b32.cont [8/16] 0.0, 128
          %769 = vxpose.xlu0.b32.cont [9/16] 0.0, 128
          %770 = vxpose.xlu0.b32.cont [10/16] 0.0, 128
          %771 = vxpose.xlu0.b32.cont [11/16] 0.0, 128
          %772 = vxpose.xlu0.b32.cont [12/16] 0.0, 128
          %773 = vxpose.xlu0.b32.cont [13/16] 0.0, 128
          %774 = vxpose.xlu0.b32.cont [14/16] 0.0, 128
          %775 = vxpose.xlu0.b32.cont [15/16] 0.0, 128
          %776 = vxpose.xlu0.b32.end [16/16] 0.0, 128
          %v777 = vpop.trf.xlu0
          %v778 = vpop.trf.xlu0
          %v779 = vpop.trf.xlu0
          %v780 = vpop.trf.xlu0
          %v781 = vpop.trf.xlu0
          %v782 = vpop.trf.xlu0
          %v783 = vpop.trf.xlu0
          %v784 = vpop.trf.xlu0
          %v785 = vpop.trf.xlu0
          %v786 = vpop.trf.xlu0
          %v787 = vpop.trf.xlu0
          %v788 = vpop.trf.xlu0
          %v789 = vpop.trf.xlu0
          %v790 = vpop.trf.xlu0
          %v791 = vpop.trf.xlu0
          %v792 = vpop.trf.xlu0
          %v793 = vpack.c.bf16 %v777, %v777
          %s794 = scalar_lea.vmem [#allocation2], 12
          %795 = vst.msk [vmem:[%s794] sm:$0xf] %vm640, %v793
          %796 = vrot.lane.b32.xlu0 %v646, 104
          %v797 = vpop.permute.xlu0 %796
          %798 = vrot.lane.b32.xlu0 %v647, 104
          %v799 = vpop.permute.xlu0 %798
          %s802 = scalar_lea.vmem [#allocation3], 24
          %803 = vst.msk [vmem:[%s802] sm:$0xf] %vm650, %v797
          %804 = vst.msk [vmem:[%s802 + $0x4] sm:$0xf] %vm650, %v799
        $region80: #{tpu_custom_call.1} parent=55 // pred_fallthru
          _
        %s805 = smul.u32 %s38, 8
        %s806 = sshra.s32 %s805, 3
        %s807 = sand.u32 %s805, 7
        %s808 = smul.addr %s806, 4
        %s809 = scalar_lea.vmem %s405, %s808 [#allocation4]
        %v810 = vld [vmem:[%s809] sm:$0xf]
        %v811 = vld [vmem:[#allocation7] sm:$0xf]
        %v812 = vld [vmem:[#allocation7 + $0x4] sm:$0xf]
        %v813 = vld [vmem:[#allocation7 + $0x8] sm:$0xf]
        %v814 = vld [vmem:[#allocation7 + $0xc] sm:$0xf]
        %v815 = vld [vmem:[%s2] sm:$0x1]
        %v817 = vlaneseq
        %v818 = vshrl.u32 %v817, 7
        %v819 = vsub.s32 0, %v818
        %v820 = vrot.slane %v815, %v819
        %v826 = vunpack.c.l.b16 %v811
        %v827 = vunpack.c.l.b16 %v812
        %v828 = vunpack.c.l.b16 %v813
        %v829 = vunpack.c.l.b16 %v814
        %v830 = vpack.c.b16 %v827, %v826
        %v831 = vpack.c.b16 %v829, %v828
        %vm834 = vcmask 261120
        %v836 = vsel %vm834, %v810, 0
        %838 = vmatprep.subr.bf16.mxu0 0
        %839 = vmatpush1.bf16.msra.mxu0 0
        %840 = vmatprep.subr.bf16.mxu0 0
        %841 = vmatpush1.bf16.msra.mxu0 0
        %842 = vmatprep.subr.bf16.mxu0 0
        %843 = vmatpush1.bf16.msra.mxu0 0
        %844 = vmatprep.subr.bf16.mxu0 0
        %845 = vmatpush1.bf16.msra.mxu0 0
        %846 = vmatprep.subr.bf16.mxu0 0
        %847 = vmatpush1.bf16.msra.mxu0 0
        %848 = vmatprep.subr.bf16.mxu0 0
        %849 = vmatpush1.bf16.msra.mxu0 0
        %850 = vmatprep.subr.bf16.mxu0 0
        %851 = vmatpush1.bf16.msra.mxu0 %v831
        %852 = vmatprep.subr.bf16.mxu0 0
        %853 = vmatpush1.bf16.msra.mxu0 %v830
        %854 = vmatprep.subr.bf16.mxu0 0
        %855 = vmatpush2.bf16.msra.mxu0 0
        %856 = vmatprep.subr.bf16.mxu0 0
        %857 = vmatpush2.bf16.msra.mxu0 0
        %858 = vmatprep.subr.bf16.mxu0 0
        %859 = vmatpush2.bf16.msra.mxu0 0
        %860 = vmatprep.subr.bf16.mxu0 0
        %861 = vmatpush2.bf16.msra.mxu0 0
        %862 = vmatprep.subr.bf16.mxu0 0
        %863 = vmatpush2.bf16.msra.mxu0 0
        %864 = vmatprep.subr.bf16.mxu0 0
        %865 = vmatpush2.bf16.msra.mxu0 0
        %866 = vmatprep.subr.bf16.mxu0 0
        %867 = vmatpush2.bf16.msra.mxu0 0
        %868 = vmatprep.subr.bf16.mxu0 0
        %869 = vmatpush2.bf16.msra.mxu0 0
        %870 = vmatprep.mubr.bf16.mxu0 0
        %871 = vmatmul.mubr.bf16.gmra.mxu0 %v836
        %v872 = vpop.f32.mrf.mxu0
        %v873 = vadd.f32 %v820, %v872
        %v874 = vpop.f32.mrf.mxu0
        %v875 = vpop.f32.mrf.mxu0
        %v876 = vpop.f32.mrf.mxu0
        %877 = vdwg.mxu0
        %v878 = vpack.c.bf16 %v873, %v873
        %880 = vrot.lane.b32.xlu0 %v878, 120
        %v881 = vpop.permute.xlu0 %880
        %882 = vrot.lane.b32.xlu0 %v878, 112
        %v883 = vpop.permute.xlu0 %882
        %884 = vrot.lane.b32.xlu0 %v878, 104
        %v885 = vpop.permute.xlu0 %884
        %v886 = vld [vmem:[#allocation2] sm:$0xf]
        %v887 = vld [vmem:[#allocation2 + $0x4] sm:$0xf]
        %v888 = vld [vmem:[#allocation2 + $0x8] sm:$0xf]
        %v889 = vld [vmem:[#allocation2 + $0xc] sm:$0xf]
        %vm890 = vcmask 64512
        %v892 = vsel %vm890, %v878, 0
        %vm894 = vcmask 1043456
        %v896 = vsel %vm894, %v886, 0
        %898 = vmatprep.subr.bf16.mxu0 0
        %899 = vmatpush1.bf16.msra.mxu0 0
        %900 = vmatprep.subr.bf16.mxu0 0
        %901 = vmatpush1.bf16.msra.mxu0 0
        %902 = vmatprep.subr.bf16.mxu0 0
        %903 = vmatpush1.bf16.msra.mxu0 0
        %904 = vmatprep.subr.bf16.mxu0 0
        %905 = vmatpush1.bf16.msra.mxu0 0
        %906 = vmatprep.subr.bf16.mxu0 0
        %907 = vmatpush1.bf16.msra.mxu0 0
        %908 = vmatprep.subr.bf16.mxu0 0
        %909 = vmatpush1.bf16.msra.mxu0 0
        %910 = vmatprep.subr.bf16.mxu0 0
        %911 = vmatpush1.bf16.msra.mxu0 0
        %912 = vmatprep.subr.bf16.mxu0 0
        %913 = vmatpush1.bf16.msra.mxu0 %v896
        %914 = vmatprep.subr.bf16.mxu0 0
        %915 = vmatpush2.bf16.msra.mxu0 0
        %916 = vmatprep.subr.bf16.mxu0 0
        %917 = vmatpush2.bf16.msra.mxu0 0
        %918 = vmatprep.subr.bf16.mxu0 0
        %919 = vmatpush2.bf16.msra.mxu0 0
        %920 = vmatprep.subr.bf16.mxu0 0
        %921 = vmatpush2.bf16.msra.mxu0 0
        %922 = vmatprep.subr.bf16.mxu0 0
        %923 = vmatpush2.bf16.msra.mxu0 0
        %924 = vmatprep.subr.bf16.mxu0 0
        %925 = vmatpush2.bf16.msra.mxu0 0
        %926 = vmatprep.subr.bf16.mxu0 0
        %927 = vmatpush2.bf16.msra.mxu0 0
        %928 = vmatprep.subr.bf16.mxu0 0
        %929 = vmatpush2.bf16.msra.mxu0 0
        %930 = vmatprep.mubr.bf16.mxu0 0
        %931 = vmatmul.mubr.bf16.gmra.mxu0 %v892
        %v932 = vpop.f32.mrf.mxu0
        %v933 = vadd.f32 0.0, %v932
        %v934 = vpop.f32.mrf.mxu0
        %v935 = vpop.f32.mrf.mxu0
        %v936 = vpop.f32.mrf.mxu0
        %937 = vdwg.mxu0
        %v939 = vsel %vm890, %v881, 0
        %v942 = vsel %vm894, %v887, 0
        %944 = vmatprep.subr.bf16.mxu0 0
        %945 = vmatpush1.bf16.msra.mxu0 0
        %946 = vmatprep.subr.bf16.mxu0 0
        %947 = vmatpush1.bf16.msra.mxu0 0
        %948 = vmatprep.subr.bf16.mxu0 0
        %949 = vmatpush1.bf16.msra.mxu0 0
        %950 = vmatprep.subr.bf16.mxu0 0
        %951 = vmatpush1.bf16.msra.mxu0 0
        %952 = vmatprep.subr.bf16.mxu0 0
        %953 = vmatpush1.bf16.msra.mxu0 0
        %954 = vmatprep.subr.bf16.mxu0 0
        %955 = vmatpush1.bf16.msra.mxu0 0
        %956 = vmatprep.subr.bf16.mxu0 0
        %957 = vmatpush1.bf16.msra.mxu0 0
        %958 = vmatprep.subr.bf16.mxu0 0
        %959 = vmatpush1.bf16.msra.mxu0 %v942
        %960 = vmatprep.subr.bf16.mxu0 0
        %961 = vmatpush2.bf16.msra.mxu0 0
        %962 = vmatprep.subr.bf16.mxu0 0
        %963 = vmatpush2.bf16.msra.mxu0 0
        %964 = vmatprep.subr.bf16.mxu0 0
        %965 = vmatpush2.bf16.msra.mxu0 0
        %966 = vmatprep.subr.bf16.mxu0 0
        %967 = vmatpush2.bf16.msra.mxu0 0
        %968 = vmatprep.subr.bf16.mxu0 0
        %969 = vmatpush2.bf16.msra.mxu0 0
        %970 = vmatprep.subr.bf16.mxu0 0
        %971 = vmatpush2.bf16.msra.mxu0 0
        %972 = vmatprep.subr.bf16.mxu0 0
        %973 = vmatpush2.bf16.msra.mxu0 0
        %974 = vmatprep.subr.bf16.mxu0 0
        %975 = vmatpush2.bf16.msra.mxu0 0
        %976 = vmatprep.mubr.bf16.mxu0 0
        %977 = vmatmul.mubr.bf16.gmra.mxu0 %v939
        %v978 = vpop.f32.mrf.mxu0
        %v979 = vadd.f32 0.0, %v978
        %v980 = vpop.f32.mrf.mxu0
        %v981 = vpop.f32.mrf.mxu0
        %v982 = vpop.f32.mrf.mxu0
        %983 = vdwg.mxu0
        %v985 = vsel %vm890, %v883, 0
        %v988 = vsel %vm894, %v888, 0
        %990 = vmatprep.subr.bf16.mxu0 0
        %991 = vmatpush1.bf16.msra.mxu0 0
        %992 = vmatprep.subr.bf16.mxu0 0
        %993 = vmatpush1.bf16.msra.mxu0 0
        %994 = vmatprep.subr.bf16.mxu0 0
        %995 = vmatpush1.bf16.msra.mxu0 0
        %996 = vmatprep.subr.bf16.mxu0 0
        %997 = vmatpush1.bf16.msra.mxu0 0
        %998 = vmatprep.subr.bf16.mxu0 0
        %999 = vmatpush1.bf16.msra.mxu0 0
        %1000 = vmatprep.subr.bf16.mxu0 0
        %1001 = vmatpush1.bf16.msra.mxu0 0
        %1002 = vmatprep.subr.bf16.mxu0 0
        %1003 = vmatpush1.bf16.msra.mxu0 0
        %1004 = vmatprep.subr.bf16.mxu0 0
        %1005 = vmatpush1.bf16.msra.mxu0 %v988
        %1006 = vmatprep.subr.bf16.mxu0 0
        %1007 = vmatpush2.bf16.msra.mxu0 0
        %1008 = vmatprep.subr.bf16.mxu0 0
        %1009 = vmatpush2.bf16.msra.mxu0 0
        %1010 = vmatprep.subr.bf16.mxu0 0
        %1011 = vmatpush2.bf16.msra.mxu0 0
        %1012 = vmatprep.subr.bf16.mxu0 0
        %1013 = vmatpush2.bf16.msra.mxu0 0
        %1014 = vmatprep.subr.bf16.mxu0 0
        %1015 = vmatpush2.bf16.msra.mxu0 0
        %1016 = vmatprep.subr.bf16.mxu0 0
        %1017 = vmatpush2.bf16.msra.mxu0 0
        %1018 = vmatprep.subr.bf16.mxu0 0
        %1019 = vmatpush2.bf16.msra.mxu0 0
        %1020 = vmatprep.subr.bf16.mxu0 0
        %1021 = vmatpush2.bf16.msra.mxu0 0
        %1022 = vmatprep.mubr.bf16.mxu0 0
        %1023 = vmatmul.mubr.bf16.gmra.mxu0 %v985
        %v1024 = vpop.f32.mrf.mxu0
        %v1025 = vadd.f32 0.0, %v1024
        %v1026 = vpop.f32.mrf.mxu0
        %v1027 = vpop.f32.mrf.mxu0
        %v1028 = vpop.f32.mrf.mxu0
        %1029 = vdwg.mxu0
        %v1031 = vsel %vm890, %v885, 0
        %v1034 = vsel %vm894, %v889, 0
        %1036 = vmatprep.subr.bf16.mxu0 0
        %1037 = vmatpush1.bf16.msra.mxu0 0
        %1038 = vmatprep.subr.bf16.mxu0 0
        %1039 = vmatpush1.bf16.msra.mxu0 0
        %1040 = vmatprep.subr.bf16.mxu0 0
        %1041 = vmatpush1.bf16.msra.mxu0 0
        %1042 = vmatprep.subr.bf16.mxu0 0
        %1043 = vmatpush1.bf16.msra.mxu0 0
        %1044 = vmatprep.subr.bf16.mxu0 0
        %1045 = vmatpush1.bf16.msra.mxu0 0
        %1046 = vmatprep.subr.bf16.mxu0 0
        %1047 = vmatpush1.bf16.msra.mxu0 0
        %1048 = vmatprep.subr.bf16.mxu0 0
        %1049 = vmatpush1.bf16.msra.mxu0 0
        %1050 = vmatprep.subr.bf16.mxu0 0
        %1051 = vmatpush1.bf16.msra.mxu0 %v1034
        %1052 = vmatprep.subr.bf16.mxu0 0
        %1053 = vmatpush2.bf16.msra.mxu0 0
        %1054 = vmatprep.subr.bf16.mxu0 0
        %1055 = vmatpush2.bf16.msra.mxu0 0
        %1056 = vmatprep.subr.bf16.mxu0 0
        %1057 = vmatpush2.bf16.msra.mxu0 0
        %1058 = vmatprep.subr.bf16.mxu0 0
        %1059 = vmatpush2.bf16.msra.mxu0 0
        %1060 = vmatprep.subr.bf16.mxu0 0
        %1061 = vmatpush2.bf16.msra.mxu0 0
        %1062 = vmatprep.subr.bf16.mxu0 0
        %1063 = vmatpush2.bf16.msra.mxu0 0
        %1064 = vmatprep.subr.bf16.mxu0 0
        %1065 = vmatpush2.bf16.msra.mxu0 0
        %1066 = vmatprep.subr.bf16.mxu0 0
        %1067 = vmatpush2.bf16.msra.mxu0 0
        %1068 = vmatprep.mubr.bf16.mxu0 0
        %1069 = vmatmul.mubr.bf16.gmra.mxu0 %v1031
        %v1070 = vpop.f32.mrf.mxu0
        %v1071 = vadd.f32 0.0, %v1070
        %v1072 = vpop.f32.mrf.mxu0
        %v1073 = vpop.f32.mrf.mxu0
        %v1074 = vpop.f32.mrf.mxu0
        %1075 = vdwg.mxu0
        %vm1076 = vcmask 130048
        %v1077 = vsel %vm1076, %v933, -inf
        %1078 = vmax.xlane.f32.xlu0 %v1077
        %v1079 = vpop.xlane.xlu0 %1078
        %v1080 = vsel %vm1076, %v979, -inf
        %1081 = vmax.xlane.f32.xlu0 %v1080
        %v1082 = vpop.xlane.xlu0 %1081
        %v1083 = vsel %vm1076, %v1025, -inf
        %1084 = vmax.xlane.f32.xlu0 %v1083
        %v1085 = vpop.xlane.xlu0 %1084
        %v1086 = vsel %vm1076, %v1071, -inf
        %1087 = vmax.xlane.f32.xlu0 %v1086
        %v1088 = vpop.xlane.xlu0 %1087
        %v1089 = vsub.f32 %v933, %v1079
        %v1090 = vsub.f32 %v979, %v1082
        %v1091 = vsub.f32 %v1025, %v1085
        %v1092 = vsub.f32 %v1071, %v1088
        %v1093 = vmul.f32 %v1089, 1.442695
        %v1094 = vpow.pop %v1093
        %v1095 = vmul.f32 %v1090, 1.442695
        %v1096 = vpow.pop %v1095
        %v1097 = vmul.f32 %v1091, 1.442695
        %v1098 = vpow.pop %v1097
        %v1099 = vmul.f32 %v1092, 1.442695
        %v1100 = vpow.pop %v1099
        %v1101 = vsel %vm1076, %v1094, 0.0
        %1102 = vadd.xlane.f32.xlu0 %v1101
        %v1103 = vpop.xlane.xlu0 %1102
        %v1104 = vsel %vm1076, %v1096, 0.0
        %1105 = vadd.xlane.f32.xlu0 %v1104
        %v1106 = vpop.xlane.xlu0 %1105
        %v1107 = vsel %vm1076, %v1098, 0.0
        %1108 = vadd.xlane.f32.xlu0 %v1107
        %v1109 = vpop.xlane.xlu0 %1108
        %v1110 = vsel %vm1076, %v1100, 0.0
        %1111 = vadd.xlane.f32.xlu0 %v1110
        %v1112 = vpop.xlane.xlu0 %1111
        %v1113 = vrcp.pop %v1103
        %v1114 = vmul.f32 1.0, %v1113
        %v1115 = vrcp.pop %v1106
        %v1116 = vmul.f32 1.0, %v1115
        %v1117 = vrcp.pop %v1109
        %v1118 = vmul.f32 1.0, %v1117
        %v1119 = vrcp.pop %v1112
        %v1120 = vmul.f32 1.0, %v1119
        %v1121 = vmul.f32 %v1094, %v1114
        %v1122 = vmul.f32 %v1096, %v1116
        %v1123 = vmul.f32 %v1098, %v1118
        %v1124 = vmul.f32 %v1100, %v1120
        %1125 = vst.msk [vmem:[%s462] sm:$0xff] %vm1076, %v1121
        %1126 = vst.msk [vmem:[%s462 + $0x8] sm:$0xff] %vm1076, %v1122
        %1127 = vst.msk [vmem:[%s462 + $0x10] sm:$0xff] %vm1076, %v1123
        %1128 = vst.msk [vmem:[%s462 + $0x18] sm:$0xff] %vm1076, %v1124
        %v1129 = vpack.c.bf16 %v1121, %v1121
        %v1130 = vpack.c.bf16 %v1122, %v1122
        %v1131 = vpack.c.bf16 %v1123, %v1123
        %v1132 = vpack.c.bf16 %v1124, %v1124
        %v1133 = vld [vmem:[#allocation3] sm:$0xf]
        %v1134 = vld [vmem:[#allocation3 + $0x4] sm:$0xf]
        %v1135 = vld [vmem:[#allocation3 + $0x8] sm:$0xf]
        %v1136 = vld [vmem:[#allocation3 + $0xc] sm:$0xf]
        %v1137 = vld [vmem:[#allocation3 + $0x10] sm:$0xf]
        %v1138 = vld [vmem:[#allocation3 + $0x14] sm:$0xf]
        %v1139 = vld [vmem:[#allocation3 + $0x18] sm:$0xf]
        %v1140 = vld [vmem:[#allocation3 + $0x1c] sm:$0xf]
        %v1143 = vunpack.c.l.b16 %v1133
        %v1144 = vunpack.c.l.b16 %v1134
        %v1145 = vpack.c.b16 %v1144, %v1143
        %v1148 = vsel %vm1076, %v1129, 0
        %1150 = vmatprep.subr.bf16.mxu0 0
        %1151 = vmatpush1.bf16.msra.mxu0 0
        %1152 = vmatprep.subr.bf16.mxu0 0
        %1153 = vmatpush1.bf16.msra.mxu0 0
        %1154 = vmatprep.subr.bf16.mxu0 0
        %1155 = vmatpush1.bf16.msra.mxu0 0
        %1156 = vmatprep.subr.bf16.mxu0 0
        %1157 = vmatpush1.bf16.msra.mxu0 0
        %1158 = vmatprep.subr.bf16.mxu0 0
        %1159 = vmatpush1.bf16.msra.mxu0 0
        %1160 = vmatprep.subr.bf16.mxu0 0
        %1161 = vmatpush1.bf16.msra.mxu0 0
        %1162 = vmatprep.subr.bf16.mxu0 0
        %1163 = vmatpush1.bf16.msra.mxu0 0
        %1164 = vmatprep.subr.bf16.mxu0 0
        %1165 = vmatpush1.bf16.msra.mxu0 %v1145
        %1166 = vmatprep.subr.bf16.mxu0 0
        %1167 = vmatpush2.bf16.msra.mxu0 0
        %1168 = vmatprep.subr.bf16.mxu0 0
        %1169 = vmatpush2.bf16.msra.mxu0 0
        %1170 = vmatprep.subr.bf16.mxu0 0
        %1171 = vmatpush2.bf16.msra.mxu0 0
        %1172 = vmatprep.subr.bf16.mxu0 0
        %1173 = vmatpush2.bf16.msra.mxu0 0
        %1174 = vmatprep.subr.bf16.mxu0 0
        %1175 = vmatpush2.bf16.msra.mxu0 0
        %1176 = vmatprep.subr.bf16.mxu0 0
        %1177 = vmatpush2.bf16.msra.mxu0 0
        %1178 = vmatprep.subr.bf16.mxu0 0
        %1179 = vmatpush2.bf16.msra.mxu0 0
        %1180 = vmatprep.subr.bf16.mxu0 0
        %1181 = vmatpush2.bf16.msra.mxu0 0
        %1182 = vmatprep.mubr.bf16.mxu0 0
        %1183 = vmatmul.mubr.bf16.gmra.mxu0 %v1148
        %v1184 = vpop.f32.mrf.mxu0
        %v1185 = vadd.f32 0.0, %v1184
        %v1186 = vpop.f32.mrf.mxu0
        %v1187 = vpop.f32.mrf.mxu0
        %v1188 = vpop.f32.mrf.mxu0
        %1189 = vdwg.mxu0
        %v1192 = vunpack.c.l.b16 %v1135
        %v1193 = vunpack.c.l.b16 %v1136
        %v1194 = vpack.c.b16 %v1193, %v1192
        %v1197 = vsel %vm1076, %v1130, 0
        %1199 = vmatprep.subr.bf16.mxu0 0
        %1200 = vmatpush1.bf16.msra.mxu0 0
        %1201 = vmatprep.subr.bf16.mxu0 0
        %1202 = vmatpush1.bf16.msra.mxu0 0
        %1203 = vmatprep.subr.bf16.mxu0 0
        %1204 = vmatpush1.bf16.msra.mxu0 0
        %1205 = vmatprep.subr.bf16.mxu0 0
        %1206 = vmatpush1.bf16.msra.mxu0 0
        %1207 = vmatprep.subr.bf16.mxu0 0
        %1208 = vmatpush1.bf16.msra.mxu0 0
        %1209 = vmatprep.subr.bf16.mxu0 0
        %1210 = vmatpush1.bf16.msra.mxu0 0
        %1211 = vmatprep.subr.bf16.mxu0 0
        %1212 = vmatpush1.bf16.msra.mxu0 0
        %1213 = vmatprep.subr.bf16.mxu0 0
        %1214 = vmatpush1.bf16.msra.mxu0 %v1194
        %1215 = vmatprep.subr.bf16.mxu0 0
        %1216 = vmatpush2.bf16.msra.mxu0 0
        %1217 = vmatprep.subr.bf16.mxu0 0
        %1218 = vmatpush2.bf16.msra.mxu0 0
        %1219 = vmatprep.subr.bf16.mxu0 0
        %1220 = vmatpush2.bf16.msra.mxu0 0
        %1221 = vmatprep.subr.bf16.mxu0 0
        %1222 = vmatpush2.bf16.msra.mxu0 0
        %1223 = vmatprep.subr.bf16.mxu0 0
        %1224 = vmatpush2.bf16.msra.mxu0 0
        %1225 = vmatprep.subr.bf16.mxu0 0
        %1226 = vmatpush2.bf16.msra.mxu0 0
        %1227 = vmatprep.subr.bf16.mxu0 0
        %1228 = vmatpush2.bf16.msra.mxu0 0
        %1229 = vmatprep.subr.bf16.mxu0 0
        %1230 = vmatpush2.bf16.msra.mxu0 0
        %1231 = vmatprep.mubr.bf16.mxu0 0
        %1232 = vmatmul.mubr.bf16.gmra.mxu0 %v1197
        %v1233 = vpop.f32.mrf.mxu0
        %v1234 = vadd.f32 0.0, %v1233
        %v1235 = vpop.f32.mrf.mxu0
        %v1236 = vpop.f32.mrf.mxu0
        %v1237 = vpop.f32.mrf.mxu0
        %1238 = vdwg.mxu0
        %v1241 = vunpack.c.l.b16 %v1137
        %v1242 = vunpack.c.l.b16 %v1138
        %v1243 = vpack.c.b16 %v1242, %v1241
        %v1246 = vsel %vm1076, %v1131, 0
        %1248 = vmatprep.subr.bf16.mxu0 0
        %1249 = vmatpush1.bf16.msra.mxu0 0
        %1250 = vmatprep.subr.bf16.mxu0 0
        %1251 = vmatpush1.bf16.msra.mxu0 0
        %1252 = vmatprep.subr.bf16.mxu0 0
        %1253 = vmatpush1.bf16.msra.mxu0 0
        %1254 = vmatprep.subr.bf16.mxu0 0
        %1255 = vmatpush1.bf16.msra.mxu0 0
        %1256 = vmatprep.subr.bf16.mxu0 0
        %1257 = vmatpush1.bf16.msra.mxu0 0
        %1258 = vmatprep.subr.bf16.mxu0 0
        %1259 = vmatpush1.bf16.msra.mxu0 0
        %1260 = vmatprep.subr.bf16.mxu0 0
        %1261 = vmatpush1.bf16.msra.mxu0 0
        %1262 = vmatprep.subr.bf16.mxu0 0
        %1263 = vmatpush1.bf16.msra.mxu0 %v1243
        %1264 = vmatprep.subr.bf16.mxu0 0
        %1265 = vmatpush2.bf16.msra.mxu0 0
        %1266 = vmatprep.subr.bf16.mxu0 0
        %1267 = vmatpush2.bf16.msra.mxu0 0
        %1268 = vmatprep.subr.bf16.mxu0 0
        %1269 = vmatpush2.bf16.msra.mxu0 0
        %1270 = vmatprep.subr.bf16.mxu0 0
        %1271 = vmatpush2.bf16.msra.mxu0 0
        %1272 = vmatprep.subr.bf16.mxu0 0
        %1273 = vmatpush2.bf16.msra.mxu0 0
        %1274 = vmatprep.subr.bf16.mxu0 0
        %1275 = vmatpush2.bf16.msra.mxu0 0
        %1276 = vmatprep.subr.bf16.mxu0 0
        %1277 = vmatpush2.bf16.msra.mxu0 0
        %1278 = vmatprep.subr.bf16.mxu0 0
        %1279 = vmatpush2.bf16.msra.mxu0 0
        %1280 = vmatprep.mubr.bf16.mxu0 0
        %1281 = vmatmul.mubr.bf16.gmra.mxu0 %v1246
        %v1282 = vpop.f32.mrf.mxu0
        %v1283 = vadd.f32 0.0, %v1282
        %v1284 = vpop.f32.mrf.mxu0
        %v1285 = vpop.f32.mrf.mxu0
        %v1286 = vpop.f32.mrf.mxu0
        %1287 = vdwg.mxu0
        %v1290 = vunpack.c.l.b16 %v1139
        %v1291 = vunpack.c.l.b16 %v1140
        %v1292 = vpack.c.b16 %v1291, %v1290
        %v1295 = vsel %vm1076, %v1132, 0
        %1297 = vmatprep.subr.bf16.mxu0 0
        %1298 = vmatpush1.bf16.msra.mxu0 0
        %1299 = vmatprep.subr.bf16.mxu0 0
        %1300 = vmatpush1.bf16.msra.mxu0 0
        %1301 = vmatprep.subr.bf16.mxu0 0
        %1302 = vmatpush1.bf16.msra.mxu0 0
        %1303 = vmatprep.subr.bf16.mxu0 0
        %1304 = vmatpush1.bf16.msra.mxu0 0
        %1305 = vmatprep.subr.bf16.mxu0 0
        %1306 = vmatpush1.bf16.msra.mxu0 0
        %1307 = vmatprep.subr.bf16.mxu0 0
        %1308 = vmatpush1.bf16.msra.mxu0 0
        %1309 = vmatprep.subr.bf16.mxu0 0
        %1310 = vmatpush1.bf16.msra.mxu0 0
        %1311 = vmatprep.subr.bf16.mxu0 0
        %1312 = vmatpush1.bf16.msra.mxu0 %v1292
        %1313 = vmatprep.subr.bf16.mxu0 0
        %1314 = vmatpush2.bf16.msra.mxu0 0
        %1315 = vmatprep.subr.bf16.mxu0 0
        %1316 = vmatpush2.bf16.msra.mxu0 0
        %1317 = vmatprep.subr.bf16.mxu0 0
        %1318 = vmatpush2.bf16.msra.mxu0 0
        %1319 = vmatprep.subr.bf16.mxu0 0
        %1320 = vmatpush2.bf16.msra.mxu0 0
        %1321 = vmatprep.subr.bf16.mxu0 0
        %1322 = vmatpush2.bf16.msra.mxu0 0
        %1323 = vmatprep.subr.bf16.mxu0 0
        %1324 = vmatpush2.bf16.msra.mxu0 0
        %1325 = vmatprep.subr.bf16.mxu0 0
        %1326 = vmatpush2.bf16.msra.mxu0 0
        %1327 = vmatprep.subr.bf16.mxu0 0
        %1328 = vmatpush2.bf16.msra.mxu0 0
        %1329 = vmatprep.mubr.bf16.mxu0 0
        %1330 = vmatmul.mubr.bf16.gmra.mxu0 %v1295
        %v1331 = vpop.f32.mrf.mxu0
        %v1332 = vadd.f32 0.0, %v1331
        %v1333 = vpop.f32.mrf.mxu0
        %v1334 = vpop.f32.mrf.mxu0
        %v1335 = vpop.f32.mrf.mxu0
        %1336 = vdwg.mxu0
        %1338 = vrot.lane.b32.xlu0 %v1234, 8
        %v1339 = vpop.permute.xlu0 %1338
        %1342 = vrot.lane.b32.xlu0 %v1283, 16
        %v1343 = vpop.permute.xlu0 %1342
        %1346 = vrot.lane.b32.xlu0 %v1332, 24
        %v1347 = vpop.permute.xlu0 %1346
        %v1349 = vsel %vm890, %v1185, %v1339
        %v1350 = vsel %vm1076, %v1349, %v1343
        %vm1351 = vcmask 195584
        %v1352 = vsel %vm1351, %v1350, %v1347
        %v1353 = vpack.c.bf16 %v1352, %v1352
        %v1354 = vld [vmem:[#allocation12] sm:$0xf]
        %v1355 = vld [vmem:[#allocation12 + $0x4] sm:$0xf]
        %v1356 = vld [vmem:[#allocation12 + $0x8] sm:$0xf]
        %v1357 = vld [vmem:[#allocation12 + $0xc] sm:$0xf]
        %v1358 = vld [vmem:[%s8] sm:$0x1]
        %v1360 = vlaneseq
        %v1361 = vshrl.u32 %v1360, 7
        %v1362 = vsub.s32 0, %v1361
        %v1363 = vrot.slane %v1358, %v1362
        %v1369 = vunpack.c.l.b16 %v1354
        %v1370 = vunpack.c.l.b16 %v1355
        %v1371 = vunpack.c.l.b16 %v1356
        %v1372 = vunpack.c.l.b16 %v1357
        %v1373 = vpack.c.b16 %v1370, %v1369
        %v1374 = vpack.c.b16 %v1372, %v1371
        %v1378 = vsel %vm834, %v1353, 0
        %1380 = vmatprep.subr.bf16.mxu0 0
        %1381 = vmatpush1.bf16.msra.mxu0 0
        %1382 = vmatprep.subr.bf16.mxu0 0
        %1383 = vmatpush1.bf16.msra.mxu0 0
        %1384 = vmatprep.subr.bf16.mxu0 0
        %1385 = vmatpush1.bf16.msra.mxu0 0
        %1386 = vmatprep.subr.bf16.mxu0 0
        %1387 = vmatpush1.bf16.msra.mxu0 0
        %1388 = vmatprep.subr.bf16.mxu0 0
        %1389 = vmatpush1.bf16.msra.mxu0 0
        %1390 = vmatprep.subr.bf16.mxu0 0
        %1391 = vmatpush1.bf16.msra.mxu0 0
        %1392 = vmatprep.subr.bf16.mxu0 0
        %1393 = vmatpush1.bf16.msra.mxu0 %v1374
        %1394 = vmatprep.subr.bf16.mxu0 0
        %1395 = vmatpush1.bf16.msra.mxu0 %v1373
        %1396 = vmatprep.subr.bf16.mxu0 0
        %1397 = vmatpush2.bf16.msra.mxu0 0
        %1398 = vmatprep.subr.bf16.mxu0 0
        %1399 = vmatpush2.bf16.msra.mxu0 0
        %1400 = vmatprep.subr.bf16.mxu0 0
        %1401 = vmatpush2.bf16.msra.mxu0 0
        %1402 = vmatprep.subr.bf16.mxu0 0
        %1403 = vmatpush2.bf16.msra.mxu0 0
        %1404 = vmatprep.subr.bf16.mxu0 0
        %1405 = vmatpush2.bf16.msra.mxu0 0
        %1406 = vmatprep.subr.bf16.mxu0 0
        %1407 = vmatpush2.bf16.msra.mxu0 0
        %1408 = vmatprep.subr.bf16.mxu0 0
        %1409 = vmatpush2.bf16.msra.mxu0 0
        %1410 = vmatprep.subr.bf16.mxu0 0
        %1411 = vmatpush2.bf16.msra.mxu0 0
        %1412 = vmatprep.mubr.bf16.mxu0 0
        %1413 = vmatmul.mubr.bf16.gmra.mxu0 %v1378
        %v1414 = vpop.f32.mrf.mxu0
        %v1415 = vadd.f32 %v1363, %v1414
        %v1416 = vpop.f32.mrf.mxu0
        %v1417 = vpop.f32.mrf.mxu0
        %v1418 = vpop.f32.mrf.mxu0
        %1419 = vdwg.mxu0
        %1420 = vst.msk [vmem:[%s455] sm:$0xff] %vm834, %v1415
        %s1421 = sand.u32 %s249, 1
        %s1422 = scalar_lea.sflag [#allocation6], %s1421
        %s1423 = sand.u32 %s249, 1
        %s1424 = smul.addr %s1423, 8
        %s1425 = scalar_lea.vmem [#allocation13], %s1424
        %s1426 = sand.u32 %s277, 1
        %s1427 = scalar_lea.sflag [#allocation15], %s1426
        %s1428 = sand.u32 %s277, 1
        %s1429 = smul.addr %s1428, 32
        %s1430 = scalar_lea.vmem [#allocation14], %s1429
        // Predicated region
        $region81: #{tpu_custom_call.1} parent=55 // pred_check
          %p1431 = pneg %p259
        $region82: #{tpu_custom_call.1} parent=55 // pred_check_branch
          %1433 = sbr.rel (%p1431) target = $region84
        $region83: #{tpu_custom_call.1} parent=55 // pred_region
          %s1435 = ssub.s32 128, 128
          %1436 = vsyncadd %s1422, %s1435
          %s1437 = smul.addr %s37, 2
          %s1438 = sadd.s32 %s38, %s1437
          %s1439 = smul.addr %s1438, 128
          %s1440 = scalar_lea.hbm %s9, %s1439
          %s1442 = sshll.u32 %s1425, 4
          %s1443 = int_to_ptr.vmem [resolvable:$true] %s1442
          %1445 = dma.vmem_to_hbm [thread:$0]  %s1443, 128, %s1440, %s1422
        $region84: #{tpu_custom_call.1} parent=55 // pred_fallthru
          _
        // Predicated region
        $region85: #{tpu_custom_call.1} parent=55 // pred_check
          %p1446 = pneg %p287
        $region86: #{tpu_custom_call.1} parent=55 // pred_check_branch
          %1448 = sbr.rel (%p1446) target = $region88
        $region87: #{tpu_custom_call.1} parent=55 // pred_region
          %s1450 = ssub.s32 512, 512
          %1451 = vsyncadd %s1427, %s1450
          %s1452 = smul.addr %s37, 8
          %s1453 = sadd.s32 %s38, %s1452
          %s1454 = smul.addr %s1453, 128
          %s1455 = scalar_lea.hbm %s10, %s1454
          %s1456 = sshll.u32 %s1430, 4
          %s1457 = int_to_ptr.vmem [resolvable:$true] %s1456
          %1462 = dma.vmem_to_hbm [thread:$0]  %s1457, 512, %s1455, %s1427, 128, 256, 8
        $region88: #{tpu_custom_call.1} parent=55 // pred_fallthru
          _
      $region56: #{tpu_custom_call.1} parent=5 // pred_fallthru
        _
      %p1463 = scmp.le.s32.totalorder 2, %s28
      // Predicated region
      $region89: #{tpu_custom_call.1} parent=5 // pred_check
        %p1464 = pneg %p1463
      $region90: #{tpu_custom_call.1} parent=5 // pred_check_branch
        %1466 = sbr.rel (%p1464) target = $region92
      $region91: #{tpu_custom_call.1} parent=5 // pred_region
        %s1467 = ssub.s32 %s28, 2
        // Predicated region
        $region93: #{tpu_custom_call.1} parent=91 // pred_check
          %p1468 = pneg %p265
        $region94: #{tpu_custom_call.1} parent=91 // pred_check_branch
          %1470 = sbr.rel (%p1468) target = $region96
        $region95: #{tpu_custom_call.1} parent=91 // pred_region
          %s1471 = sand.u32 %s250, 1
          %s1472 = scalar_lea.sflag [#allocation6], %s1471
          %s1473 = sand.u32 %s250, 1
          %s1474 = smul.addr %s1473, 8
          %s1475 = scalar_lea.vmem [#allocation13], %s1474
          %1476 = dma.done %s1472, 128
        $region96: #{tpu_custom_call.1} parent=91 // pred_fallthru
          _
        // Predicated region
        $region97: #{tpu_custom_call.1} parent=91 // pred_check
          %p1477 = pneg %p293
        $region98: #{tpu_custom_call.1} parent=91 // pred_check_branch
          %1479 = sbr.rel (%p1477) target = $region100
        $region99: #{tpu_custom_call.1} parent=91 // pred_region
          %s1480 = sand.u32 %s278, 1
          %s1481 = scalar_lea.sflag [#allocation15], %s1480
          %s1482 = sand.u32 %s278, 1
          %s1483 = smul.addr %s1482, 32
          %s1484 = scalar_lea.vmem [#allocation14], %s1483
          %1485 = dma.done %s1481, 512
        $region100: #{tpu_custom_call.1} parent=91 // pred_fallthru
          _
      $region92: #{tpu_custom_call.1} parent=5 // pred_fallthru
        _
    $region6: #{tpu_custom_call.1} parent=1 // loop_footer
      %s32 = sadd.s32 1, %s28
    $region7: #{tpu_custom_call.1} parent=1 // loop_footer_branch
      %27 = sbr.rel target = $region3
    $region8: #{tpu_custom_call.1} parent=1 // loop_exit
      _
    %1486 = vsyncpa [#allocation5], 1
    %s1487 = scalar_lea.sflag [#allocation5], 1
    %1488 = vsyncpa %s1487, 1
    %1489 = vsyncpa [#allocation8], 1
    %1490 = vsyncpa [#allocation11], 1
    %1491 = vsyncpa [#allocation6], 1
    %s1492 = scalar_lea.sflag [#allocation6], 1
    %1493 = vsyncpa %s1492, 1
    %1494 = vsyncpa [#allocation15], 1
    %s1495 = scalar_lea.sflag [#allocation15], 1
    %1496 = vsyncpa %s1495, 1

</llo_original>
